<compile_context>
chip_gen: v5e
topology: v5e:2x2
jax: 0.10.0
libtpu: 0.0.40
codegen_flags: <defaults>
</compile_context>

<pallas_src>
import functools

import jax
import jax.numpy as jnp
from jax import lax
from jax.experimental import pallas as pl
from jax.experimental.pallas import tpu as pltpu


def _round_up(x, m):
    return (x + m - 1) // m * m


def _supcon_tiled_kernel(rowf_ref, colf_ref, gid_row_ref, gid_col_ref,
                         out_ref, m_sc, l_sc, sml_sc, sm_sc,
                         *, inv_temp, neg_temp_ratio, n_valid, tm, tn):
    i = pl.program_id(0)          # anchor-row tile
    k = pl.program_id(1)          # contrast-column tile (reduction axis, last)

    @pl.when(k == 0)
    def _():
        m_sc[...] = jnp.full_like(m_sc, -jnp.inf)
        l_sc[...] = jnp.zeros_like(l_sc)
        sml_sc[...] = jnp.zeros_like(sml_sc)
        sm_sc[...] = jnp.zeros_like(sm_sc)

    # (TM, TN) tile of scaled logits: bf16 x bf16 on the MXU, f32 accumulate.
    # Contract dim 1 of both operands so the RHS tile is not explicitly transposed.
    logits = lax.dot_general(
        rowf_ref[...], colf_ref[...],
        dimension_numbers=(((1,), (1,)), ((), ())),
        preferred_element_type=jnp.float32,
    ) * inv_temp

    # Per-tile self-contrast (diagonal) + padding masks from global indices
    # (no N x N int temporaries).
    row_g = i * tm + lax.broadcasted_iota(jnp.int32, (tm, tn), 0)
    col_g = k * tn + lax.broadcasted_iota(jnp.int32, (tm, tn), 1)
    denom_mask = jnp.logical_and(row_g != col_g, col_g < n_valid)   # logits_mask

    # Positive-pair mask computed on the fly from group ids (labels).
    pos = jnp.logical_and(gid_row_ref[...] == gid_col_ref[...], denom_mask)

    # --- online softmax-denominator statistics (flash style) ---
    m_prev = m_sc[...]
    m_new = jnp.maximum(m_prev, jnp.max(logits, axis=1, keepdims=True))
    alpha = jnp.exp(m_prev - m_new)
    p = jnp.where(denom_mask, jnp.exp(logits - m_new), 0.0)
    l_sc[...] = alpha * l_sc[...] + jnp.sum(p, axis=1, keepdims=True)
    m_sc[...] = m_new

    # --- fused positive-pair statistics (row max cancels, use raw scaled logits) ---
    sml_sc[...] += jnp.sum(jnp.where(pos, logits, 0.0), axis=1, keepdims=True)
    sm_sc[...] += jnp.sum(pos.astype(jnp.float32), axis=1, keepdims=True)

    @pl.when(k == pl.num_programs(1) - 1)
    def _():
        log_denom = m_sc[...] + jnp.log(l_sc[...])                 # logsumexp (off-diag)
        mean_log_prob_pos = sml_sc[...] / sm_sc[...] - log_denom
        out_ref[...] = neg_temp_ratio * mean_log_prob_pos


def supcon_loss(features, labels=None, mask=None, *, temperature=0.07,
                base_temperature=0.07, contrast_mode="all", reduction="mean"):
    """features: [bsz, n_views, ...] (trailing dims flattened). Returns a scalar loss."""
    if features.ndim < 3:
        raise ValueError("`features` needs to be [bsz, n_views, ...]")
    if features.ndim > 3:
        features = features.reshape(features.shape[0], features.shape[1], -1)
    if contrast_mode != "all":
        # TODO(synk): contrast_mode='one' not implemented (only changes anchor slicing)
        raise ValueError("only contrast_mode='all' is implemented")

    bsz, n_views, dim = features.shape

    if labels is not None and mask is not None:
        raise ValueError("Cannot define both `labels` and `mask`")
    if mask is not None:
        # TODO(synk): explicit (possibly asymmetric) bsz x bsz `mask` is not expressible
        # as group ids; pass `labels` instead (the group-id kernel path is used here).
        raise NotImplementedError("explicit `mask` not supported; pass `labels`")
    if labels is None:
        gid_base = jnp.arange(bsz, dtype=jnp.int32)        # SimCLR: positives = other views
    else:
        labels = jnp.asarray(labels).reshape(-1)
        if labels.shape[0] != bsz:
            raise ValueError("Num of labels does not match num of features")
        gid_base = labels.astype(jnp.int32)

    n = bsz * n_views
    # contrast_feature = cat(unbind(features, dim=1), dim=0)  -> view-major ordering.
    # Keep it bf16 in HBM / into the MXU; f32 only in the accumulator.
    cf = jnp.transpose(features, (1, 0, 2)).reshape(n, dim).astype(jnp.bfloat16)
    gid = jnp.tile(gid_base, n_views)                      # (n,)

    # Tile sizes (MXU/lane aligned) + padded extents.
    if n <= 512:
        tm = tn = _round_up(n, 128)
    else:
        tm, tn = 256, 512
    n_pad = _round_up(n, max(tm, tn))                      # tm divides tn here
    d_pad = _round_up(dim, 128)

    cf = jnp.pad(cf, ((0, n_pad - n), (0, d_pad - dim)))
    gid_p = jnp.pad(gid, (0, n_pad - n), constant_values=-1)
    gid_row = gid_p.reshape(n_pad, 1)
    gid_col = gid_p.reshape(1, n_pad)

    kernel = functools.partial(
        _supcon_tiled_kernel,
        inv_temp=float(1.0 / temperature),
        neg_temp_ratio=-float(temperature) / float(base_temperature),
        n_valid=n, tm=tm, tn=tn,
    )

    per_anchor = pl.pallas_call(
        kernel,
        out_shape=jax.ShapeDtypeStruct((n_pad, 1), jnp.float32),
        grid_spec=pltpu.PrefetchScalarGridSpec(
            num_scalar_prefetch=0,
            grid=(n_pad // tm, n_pad // tn),
            in_specs=[
                pl.BlockSpec((tm, d_pad), lambda i, k: (i, 0)),   # anchor rows (resident over k)
                pl.BlockSpec((tn, d_pad), lambda i, k: (k, 0)),   # contrast columns (streamed)
                pl.BlockSpec((tm, 1), lambda i, k: (i, 0)),       # group ids, row slice
                pl.BlockSpec((1, tn), lambda i, k: (0, k)),       # group ids, column slice
            ],
            out_specs=pl.BlockSpec((tm, 1), lambda i, k: (i, 0)),
            scratch_shapes=[pltpu.VMEM((tm, 1), jnp.float32)] * 4,
        ),
        compiler_params=pltpu.CompilerParams(
            dimension_semantics=("parallel", "arbitrary")),
    )(cf, cf, gid_row, gid_col)

    per_anchor = per_anchor[:n, 0]
    loss_mean = jnp.mean(per_anchor)
    if reduction == "mean":
        return loss_mean
    # loss.view(anchor_count, bsz).mean(0).sum() == mean over all N anchors * bsz
    return loss_mean * bsz


def _supcon_loss_ref(features, labels, *, temperature=0.07, base_temperature=0.07):
    """Pure-JAX reference mirroring the PyTorch forward (contrast_mode='all', mean)."""
    bsz, n_views, dim = features.shape
    mask = jnp.equal(labels.reshape(-1, 1), labels.reshape(1, -1)).astype(jnp.float32)
    cf = jnp.transpose(features, (1, 0, 2)).reshape(bsz * n_views, dim)
    logits = jnp.dot(cf, cf.T) / temperature
    logits = logits - jnp.max(logits, axis=1, keepdims=True)
    n = bsz * n_views
    logits_mask = 1.0 - jnp.eye(n, dtype=jnp.float32)
    mask = jnp.tile(mask, (n_views, n_views)) * logits_mask
    exp_logits = jnp.exp(logits) * logits_mask
    log_prob = logits - jnp.log(jnp.sum(exp_logits, axis=1, keepdims=True))
    mean_log_prob_pos = jnp.sum(mask * log_prob, axis=1) / jnp.sum(mask, axis=1)
    loss = -(temperature / base_temperature) * mean_log_prob_pos
    return jnp.mean(loss)


if __name__ == "__main__":
    key = jax.random.PRNGKey(0)
    bsz, n_views, dim = 8, 2, 32
    k1, k2 = jax.random.split(key)

    feats = jax.random.normal(k1, (bsz, n_views, dim), dtype=jnp.float32)
    # L2-normalize features along the feature dim (standard SupCon input)
    feats = feats / jnp.linalg.norm(feats, axis=-1, keepdims=True)
    labels = jax.random.randint(k2, (bsz,), 0, 3)

    # Supervised path
    loss = supcon_loss(feats, labels=labels, temperature=0.07,
                       base_temperature=0.07, reduction="mean")
    loss = jax.block_until_ready(loss)

    # Reference uses the same bf16-rounded features (kernel feeds the MXU bf16).
    feats_bf = feats.astype(jnp.bfloat16).astype(jnp.float32)
    ref = _supcon_loss_ref(feats_bf, labels)
    assert jnp.allclose(loss, ref, rtol=1e-3, atol=1e-3), (loss, ref)

    # SimCLR (unsupervised) path: labels=None, mask=None  -> identity group ids
    loss_simclr = jax.block_until_ready(supcon_loss(feats))
    ref_simclr = _supcon_loss_ref(feats_bf, jnp.arange(bsz, dtype=jnp.int32))
    assert jnp.allclose(loss_simclr, ref_simclr, rtol=1e-3, atol=1e-3), (
        loss_simclr, ref_simclr)

    print("KERNEL_OK")
</pallas_src>

<mosaic_0001>
module attributes {stable_mosaic.version = 11 : i64} {
  func.func @_supcon_tiled_kernel(%arg0: i32, %arg1: i32, %arg2: memref<128x128xbf16, #tpu.memory_space<vmem>>, %arg3: memref<128x128xbf16, #tpu.memory_space<vmem>>, %arg4: memref<128x1xi32, #tpu.memory_space<vmem>>, %arg5: memref<1x128xi32, #tpu.memory_space<vmem>>, %arg6: memref<128x1xf32, #tpu.memory_space<vmem>>, %arg7: memref<128x1xf32, #tpu.memory_space<vmem>>, %arg8: memref<128x1xf32, #tpu.memory_space<vmem>>, %arg9: memref<128x1xf32, #tpu.memory_space<vmem>>, %arg10: memref<128x1xf32, #tpu.memory_space<vmem>>) attributes {dimension_semantics = [#tpu.dimension_semantics<parallel>, #tpu.dimension_semantics<arbitrary>], iteration_bounds = array<i64: 1, 1>, scalar_prefetch = 0 : i64, scratch_operands = 4 : i64, tpu.core_type = #tpu.core_type<tc>, window_params = [{transform_indices = @transform_0, window_bounds = array<i64: 128, 128>}, {transform_indices = @transform_1, window_bounds = array<i64: 128, 128>}, {transform_indices = @transform_2, window_bounds = array<i64: 128, 1>}, {transform_indices = @transform_3, window_bounds = array<i64: 1, 128>}, {transform_indices = @transform_4, window_bounds = array<i64: 128, 1>}]} {
    %c0_i32 = arith.constant 0 : i32
    %0 = arith.cmpi eq, %arg1, %c0_i32 : i32
    %1 = arith.extui %0 : i1 to i32
    %c0_i32_0 = arith.constant 0 : i32
    %2 = arith.cmpi ne, %1, %c0_i32_0 : i32
    scf.if %2 {
      %cst_34 = arith.constant 0xFF800000 : f32
      %61 = vector.broadcast %cst_34 : f32 to vector<128x1xf32>
      %c0_35 = arith.constant 0 : index
      %c0_36 = arith.constant 0 : index
      %62 = vector.load %arg7[%c0_35, %c0_36] : memref<128x1xf32, #tpu.memory_space<vmem>>, vector<128x1xf32>
      tpu.vector_store %arg7[%c0_35, %c0_36], %61 {strides = array<i32>} : memref<128x1xf32, #tpu.memory_space<vmem>>, vector<128x1xf32>,
      %cst_37 = arith.constant 0.000000e+00 : f32
      %63 = vector.broadcast %cst_37 : f32 to vector<128x1xf32>
      %c0_38 = arith.constant 0 : index
      %c0_39 = arith.constant 0 : index
      %64 = vector.load %arg8[%c0_38, %c0_39] : memref<128x1xf32, #tpu.memory_space<vmem>>, vector<128x1xf32>
      tpu.vector_store %arg8[%c0_38, %c0_39], %63 {strides = array<i32>} : memref<128x1xf32, #tpu.memory_space<vmem>>, vector<128x1xf32>,
      %cst_40 = arith.constant 0.000000e+00 : f32
      %65 = vector.broadcast %cst_40 : f32 to vector<128x1xf32>
      %c0_41 = arith.constant 0 : index
      %c0_42 = arith.constant 0 : index
      %66 = vector.load %arg9[%c0_41, %c0_42] : memref<128x1xf32, #tpu.memory_space<vmem>>, vector<128x1xf32>
      tpu.vector_store %arg9[%c0_41, %c0_42], %65 {strides = array<i32>} : memref<128x1xf32, #tpu.memory_space<vmem>>, vector<128x1xf32>,
      %cst_43 = arith.constant 0.000000e+00 : f32
      %67 = vector.broadcast %cst_43 : f32 to vector<128x1xf32>
      %c0_44 = arith.constant 0 : index
      %c0_45 = arith.constant 0 : index
      %68 = vector.load %arg10[%c0_44, %c0_45] : memref<128x1xf32, #tpu.memory_space<vmem>>, vector<128x1xf32>
      tpu.vector_store %arg10[%c0_44, %c0_45], %67 {strides = array<i32>} : memref<128x1xf32, #tpu.memory_space<vmem>>, vector<128x1xf32>,
    } else {
    }
    %c0 = arith.constant 0 : index
    %c0_1 = arith.constant 0 : index
    %3 = vector.load %arg2[%c0, %c0_1] : memref<128x128xbf16, #tpu.memory_space<vmem>>, vector<128x128xbf16>
    %c0_2 = arith.constant 0 : index
    %c0_3 = arith.constant 0 : index
    %4 = vector.load %arg3[%c0_2, %c0_3] : memref<128x128xbf16, #tpu.memory_space<vmem>>, vector<128x128xbf16>
    %cst = arith.constant dense<0.000000e+00> : vector<128x128xf32>
    %5 = tpu.matmul %3, %4, %cst {dimension_numbers = #tpu.dot_dimension_numbers<[1], [1], [0], [0], [0, 0, 1, 0], [], []>} : vector<128x128xbf16>, vector<128x128xbf16>, vector<128x128xf32> -> vector<128x128xf32>
    %cst_4 = arith.constant 14.2857141 : f32
    %6 = vector.broadcast %cst_4 : f32 to vector<128x128xf32>
    %7 = arith.mulf %5, %6 : vector<128x128xf32>
    %c128_i32 = arith.constant 128 : i32
    %8 = arith.muli %arg0, %c128_i32 : i32
    %9 = tpu.iota {dimensions = array<i32: 0>} : vector<128x128xi32>
    %10 = vector.broadcast %8 : i32 to vector<128x128xi32>
    %11 = arith.addi %10, %9 : vector<128x128xi32>
    %c128_i32_5 = arith.constant 128 : i32
    %12 = arith.muli %arg1, %c128_i32_5 : i32
    %13 = tpu.iota {dimensions = array<i32: 1>} : vector<128x128xi32>
    %14 = vector.broadcast %12 : i32 to vector<128x128xi32>
    %15 = arith.addi %14, %13 : vector<128x128xi32>
    %16 = arith.cmpi ne, %11, %15 : vector<128x128xi32>
    %c16_i32 = arith.constant 16 : i32
    %17 = vector.broadcast %c16_i32 : i32 to vector<128x128xi32>
    %18 = arith.cmpi slt, %15, %17 : vector<128x128xi32>
    %19 = arith.andi %16, %18 : vector<128x128xi1>
    %c0_6 = arith.constant 0 : index
    %c0_7 = arith.constant 0 : index
    %20 = vector.load %arg4[%c0_6, %c0_7] : memref<128x1xi32, #tpu.memory_space<vmem>>, vector<128x1xi32>
    %c0_8 = arith.constant 0 : index
    %c0_9 = arith.constant 0 : index
    %21 = vector.load %arg5[%c0_8, %c0_9] : memref<1x128xi32, #tpu.memory_space<vmem>>, vector<1x128xi32>
    %22 = vector.broadcast %20 : vector<128x1xi32> to vector<128x128xi32>
    %23 = vector.broadcast %21 : vector<1x128xi32> to vector<128x128xi32>
    %24 = arith.cmpi eq, %22, %23 : vector<128x128xi32>
    %25 = arith.andi %24, %19 : vector<128x128xi1>
    %c0_10 = arith.constant 0 : index
    %c0_11 = arith.constant 0 : index
    %26 = vector.load %arg7[%c0_10, %c0_11] : memref<128x1xf32, #tpu.memory_space<vmem>>, vector<128x1xf32>
    %cst_12 = arith.constant dense<0xFF800000> : vector<128xf32>
    %27 = vector.multi_reduction <maximumf>, %7, %cst_12 [1] : vector<128x128xf32> to vector<128xf32>
    %28 = vector.shape_cast %27 : vector<128xf32> to vector<128x1xf32>
    %29 = arith.maximumf %26, %28 : vector<128x1xf32>
    %30 = arith.subf %26, %29 : vector<128x1xf32>
    %31 = math.exp %30 : vector<128x1xf32>
    %32 = vector.broadcast %29 : vector<128x1xf32> to vector<128x128xf32>
    %33 = arith.subf %7, %32 : vector<128x128xf32>
    %34 = math.exp %33 : vector<128x128xf32>
    %cst_13 = arith.constant 0.000000e+00 : f32
    %35 = vector.broadcast %cst_13 : f32 to vector<128x128xf32>
    %36 = arith.select %19, %34, %35 : vector<128x128xi1>, vector<128x128xf32>
    %c0_14 = arith.constant 0 : index
    %c0_15 = arith.constant 0 : index
    %37 = vector.load %arg8[%c0_14, %c0_15] : memref<128x1xf32, #tpu.memory_space<vmem>>, vector<128x1xf32>
    %38 = arith.mulf %31, %37 : vector<128x1xf32>
    %cst_16 = arith.constant dense<0.000000e+00> : vector<128xf32>
    %39 = vector.multi_reduction <add>, %36, %cst_16 [1] : vector<128x128xf32> to vector<128xf32>
    %40 = vector.shape_cast %39 : vector<128xf32> to vector<128x1xf32>
    %41 = arith.addf %38, %40 : vector<128x1xf32>
    %c0_17 = arith.constant 0 : index
    %c0_18 = arith.constant 0 : index
    %42 = vector.load %arg8[%c0_17, %c0_18] : memref<128x1xf32, #tpu.memory_space<vmem>>, vector<128x1xf32>
    tpu.vector_store %arg8[%c0_17, %c0_18], %41 {strides = array<i32>} : memref<128x1xf32, #tpu.memory_space<vmem>>, vector<128x1xf32>,
    %c0_19 = arith.constant 0 : index
    %c0_20 = arith.constant 0 : index
    %43 = vector.load %arg7[%c0_19, %c0_20] : memref<128x1xf32, #tpu.memory_space<vmem>>, vector<128x1xf32>
    tpu.vector_store %arg7[%c0_19, %c0_20], %29 {strides = array<i32>} : memref<128x1xf32, #tpu.memory_space<vmem>>, vector<128x1xf32>,
    %c0_21 = arith.constant 0 : index
    %c0_22 = arith.constant 0 : index
    %44 = vector.load %arg9[%c0_21, %c0_22] : memref<128x1xf32, #tpu.memory_space<vmem>>, vector<128x1xf32>
    %cst_23 = arith.constant 0.000000e+00 : f32
    %45 = vector.broadcast %cst_23 : f32 to vector<128x128xf32>
    %46 = arith.select %25, %7, %45 : vector<128x128xi1>, vector<128x128xf32>
    %cst_24 = arith.constant dense<0.000000e+00> : vector<128xf32>
    %47 = vector.multi_reduction <add>, %46, %cst_24 [1] : vector<128x128xf32> to vector<128xf32>
    %48 = vector.shape_cast %47 : vector<128xf32> to vector<128x1xf32>
    %49 = arith.addf %44, %48 : vector<128x1xf32>
    %c0_25 = arith.constant 0 : index
    %c0_26 = arith.constant 0 : index
    %50 = vector.load %arg9[%c0_25, %c0_26] : memref<128x1xf32, #tpu.memory_space<vmem>>, vector<128x1xf32>
    tpu.vector_store %arg9[%c0_25, %c0_26], %49 {strides = array<i32>} : memref<128x1xf32, #tpu.memory_space<vmem>>, vector<128x1xf32>,
    %c0_27 = arith.constant 0 : index
    %c0_28 = arith.constant 0 : index
    %51 = vector.load %arg10[%c0_27, %c0_28] : memref<128x1xf32, #tpu.memory_space<vmem>>, vector<128x1xf32>
    %52 = arith.extui %25 : vector<128x128xi1> to vector<128x128xi32>
    %53 = arith.sitofp %52 : vector<128x128xi32> to vector<128x128xf32>
    %cst_29 = arith.constant dense<0.000000e+00> : vector<128xf32>
    %54 = vector.multi_reduction <add>, %53, %cst_29 [1] : vector<128x128xf32> to vector<128xf32>
    %55 = vector.shape_cast %54 : vector<128xf32> to vector<128x1xf32>
    %56 = arith.addf %51, %55 : vector<128x1xf32>
    %c0_30 = arith.constant 0 : index
    %c0_31 = arith.constant 0 : index
    %57 = vector.load %arg10[%c0_30, %c0_31] : memref<128x1xf32, #tpu.memory_space<vmem>>, vector<128x1xf32>
    tpu.vector_store %arg10[%c0_30, %c0_31], %56 {strides = array<i32>} : memref<128x1xf32, #tpu.memory_space<vmem>>, vector<128x1xf32>,
    %c0_i32_32 = arith.constant 0 : i32
    %58 = arith.cmpi eq, %arg1, %c0_i32_32 : i32
    %59 = arith.extui %58 : i1 to i32
    %c0_i32_33 = arith.constant 0 : i32
    %60 = arith.cmpi ne, %59, %c0_i32_33 : i32
    scf.if %60 {
      %c0_34 = arith.constant 0 : index
      %c0_35 = arith.constant 0 : index
      %61 = vector.load %arg7[%c0_34, %c0_35] : memref<128x1xf32, #tpu.memory_space<vmem>>, vector<128x1xf32>
      %c0_36 = arith.constant 0 : index
      %c0_37 = arith.constant 0 : index
      %62 = vector.load %arg8[%c0_36, %c0_37] : memref<128x1xf32, #tpu.memory_space<vmem>>, vector<128x1xf32>
      %63 = math.log %62 : vector<128x1xf32>
      %64 = arith.addf %61, %63 : vector<128x1xf32>
      %c0_38 = arith.constant 0 : index
      %c0_39 = arith.constant 0 : index
      %65 = vector.load %arg9[%c0_38, %c0_39] : memref<128x1xf32, #tpu.memory_space<vmem>>, vector<128x1xf32>
      %c0_40 = arith.constant 0 : index
      %c0_41 = arith.constant 0 : index
      %66 = vector.load %arg10[%c0_40, %c0_41] : memref<128x1xf32, #tpu.memory_space<vmem>>, vector<128x1xf32>
      %67 = arith.divf %65, %66 : vector<128x1xf32>
      %68 = arith.subf %67, %64 : vector<128x1xf32>
      %cst_42 = arith.constant -1.000000e+00 : f32
      %69 = vector.broadcast %cst_42 : f32 to vector<128x1xf32>
      %70 = arith.mulf %69, %68 : vector<128x1xf32>
      %c0_43 = arith.constant 0 : index
      %c0_44 = arith.constant 0 : index
      %71 = vector.load %arg6[%c0_43, %c0_44] : memref<128x1xf32, #tpu.memory_space<vmem>>, vector<128x1xf32>
      tpu.vector_store %arg6[%c0_43, %c0_44], %70 {strides = array<i32>} : memref<128x1xf32, #tpu.memory_space<vmem>>, vector<128x1xf32>,
    } else {
    }
    return
  }
  func.func @transform_0(%arg0: i32, %arg1: i32) -> (i32, i32) {
    %c0_i32 = arith.constant 0 : i32
    %c0_i32_0 = arith.constant 0 : i32
    return %arg0, %c0_i32 : i32, i32
  }
  func.func @transform_1(%arg0: i32, %arg1: i32) -> (i32, i32) {
    %c0_i32 = arith.constant 0 : i32
    %c0_i32_0 = arith.constant 0 : i32
    return %arg1, %c0_i32 : i32, i32
  }
  func.func @transform_2(%arg0: i32, %arg1: i32) -> (i32, i32) {
    %c0_i32 = arith.constant 0 : i32
    %c0_i32_0 = arith.constant 0 : i32
    return %arg0, %c0_i32 : i32, i32
  }
  func.func @transform_3(%arg0: i32, %arg1: i32) -> (i32, i32) {
    %c0_i32 = arith.constant 0 : i32
    %c0_i32_0 = arith.constant 0 : i32
    return %c0_i32, %arg1 : i32, i32
  }
  func.func @transform_4(%arg0: i32, %arg1: i32) -> (i32, i32) {
    %c0_i32 = arith.constant 0 : i32
    %c0_i32_0 = arith.constant 0 : i32
    return %arg0, %c0_i32 : i32, i32
  }
}

</mosaic_0001>

<llo_original>
// kernel: tpu_custom_call.1
$region0: #{tpu_custom_call.1}
  #allocation0 [shape = 'u32[]', space=smem, size = 0x4, offset = 0x4, fixed_abs, tag = 'smem constant byte address 0x4 - core index']
  #allocation1 [shape = 'u32[72,128]{1,0:T(1,128)}', space=vmem, size = 0x9000, scoped, tag = 'internal scratch']
  #allocation2 [shape = 'f32[128,1]{1,0:T(8,128)}', space=vmem, size = 0x10000, scoped, tag = 'scratch operand']
  #allocation3 [shape = 'f32[128,1]{1,0:T(8,128)}', space=vmem, size = 0x10000, scoped, tag = 'scratch operand']
  #allocation4 [shape = 'f32[128,1]{1,0:T(8,128)}', space=vmem, size = 0x10000, scoped, tag = 'scratch operand']
  #allocation5 [shape = 'f32[128,1]{1,0:T(8,128)}', space=vmem, size = 0x10000, scoped, tag = 'scratch operand']
  %s0 = inlined_call_operand.vmem [shape: bf16[128,128], index: 0, kind: input, shape index: {}]
  %s1 = inlined_call_operand.vmem [shape: bf16[128,128], index: 1, kind: input, shape index: {}]
  %s2 = inlined_call_operand.vmem [shape: s32[128,1], index: 2, kind: input, shape index: {}]
  %s3 = inlined_call_operand.vmem [shape: s32[1,128], index: 3, kind: input, shape index: {}]
  %s4 = inlined_call_operand.vmem [shape: f32[128,1], index: 4, kind: output, shape index: {}]
  %s5 = sld [smem:[#allocation0]]
  $region34: #{tpu_custom_call.1} parent=0
    _
  %s7 = ssub.s32 1, %s5
  %s8 = scalar_select 0, %s7, %s5
  // Predicated region
  $region2: #{tpu_custom_call.1} parent=0 // pred_check
    _
  $region3: #{tpu_custom_call.1} parent=0 // pred_check_branch
    %10 = sbr.rel (0) target = $region5
  $region4: #{tpu_custom_call.1} parent=0 // pred_region
    _
  $region5: #{tpu_custom_call.1} parent=0 // pred_fallthru
    _
  // Predicated region
  $region6: #{tpu_custom_call.1} parent=0 // pred_check
    _
  $region7: #{tpu_custom_call.1} parent=0 // pred_check_branch
    %12 = sbr.rel (0) target = $region9
  $region8: #{tpu_custom_call.1} parent=0 // pred_region
    _
  $region9: #{tpu_custom_call.1} parent=0 // pred_fallthru
    _
  // Predicated region
  $region10: #{tpu_custom_call.1} parent=0 // pred_check
    _
  $region11: #{tpu_custom_call.1} parent=0 // pred_check_branch
    %14 = sbr.rel (0) target = $region13
  $region12: #{tpu_custom_call.1} parent=0 // pred_region
    _
  $region13: #{tpu_custom_call.1} parent=0 // pred_fallthru
    _
  // Predicated region
  $region14: #{tpu_custom_call.1} parent=0 // pred_check
    _
  $region15: #{tpu_custom_call.1} parent=0 // pred_check_branch
    %16 = sbr.rel (0) target = $region17
  $region16: #{tpu_custom_call.1} parent=0 // pred_region
    _
  $region17: #{tpu_custom_call.1} parent=0 // pred_fallthru
    _
  %p17 = scmp.eq.s32.totalorder 0, 0
  // Predicated region
  $region18: #{tpu_custom_call.1} parent=0 // pred_check
    %p18 = pneg %p17
  $region19: #{tpu_custom_call.1} parent=0 // pred_check_branch
    %20 = sbr.rel (%p18) target = $region21
  $region20: #{tpu_custom_call.1} parent=0 // pred_region
    %vm21 = vcmask 7168
    %22 = vst.msk [vmem:[#allocation2] sm:$0xff] %vm21, -inf
    %23 = vst.msk [vmem:[#allocation2 + $0x8] sm:$0xff] %vm21, -inf
    %24 = vst.msk [vmem:[#allocation2 + $0x10] sm:$0xff] %vm21, -inf
    %25 = vst.msk [vmem:[#allocation2 + $0x18] sm:$0xff] %vm21, -inf
    %26 = vst.msk [vmem:[#allocation2 + $0x20] sm:$0xff] %vm21, -inf
    %27 = vst.msk [vmem:[#allocation2 + $0x28] sm:$0xff] %vm21, -inf
    %28 = vst.msk [vmem:[#allocation2 + $0x30] sm:$0xff] %vm21, -inf
    %29 = vst.msk [vmem:[#allocation2 + $0x38] sm:$0xff] %vm21, -inf
    %30 = vst.msk [vmem:[#allocation2 + $0x40] sm:$0xff] %vm21, -inf
    %31 = vst.msk [vmem:[#allocation2 + $0x48] sm:$0xff] %vm21, -inf
    %32 = vst.msk [vmem:[#allocation2 + $0x50] sm:$0xff] %vm21, -inf
    %33 = vst.msk [vmem:[#allocation2 + $0x58] sm:$0xff] %vm21, -inf
    %34 = vst.msk [vmem:[#allocation2 + $0x60] sm:$0xff] %vm21, -inf
    %35 = vst.msk [vmem:[#allocation2 + $0x68] sm:$0xff] %vm21, -inf
    %36 = vst.msk [vmem:[#allocation2 + $0x70] sm:$0xff] %vm21, -inf
    %37 = vst.msk [vmem:[#allocation2 + $0x78] sm:$0xff] %vm21, -inf
    %38 = vst.msk [vmem:[#allocation3] sm:$0xff] %vm21, 0.0
    %39 = vst.msk [vmem:[#allocation3 + $0x8] sm:$0xff] %vm21, 0.0
    %40 = vst.msk [vmem:[#allocation3 + $0x10] sm:$0xff] %vm21, 0.0
    %41 = vst.msk [vmem:[#allocation3 + $0x18] sm:$0xff] %vm21, 0.0
    %42 = vst.msk [vmem:[#allocation3 + $0x20] sm:$0xff] %vm21, 0.0
    %43 = vst.msk [vmem:[#allocation3 + $0x28] sm:$0xff] %vm21, 0.0
    %44 = vst.msk [vmem:[#allocation3 + $0x30] sm:$0xff] %vm21, 0.0
    %45 = vst.msk [vmem:[#allocation3 + $0x38] sm:$0xff] %vm21, 0.0
    %46 = vst.msk [vmem:[#allocation3 + $0x40] sm:$0xff] %vm21, 0.0
    %47 = vst.msk [vmem:[#allocation3 + $0x48] sm:$0xff] %vm21, 0.0
    %48 = vst.msk [vmem:[#allocation3 + $0x50] sm:$0xff] %vm21, 0.0
    %49 = vst.msk [vmem:[#allocation3 + $0x58] sm:$0xff] %vm21, 0.0
    %50 = vst.msk [vmem:[#allocation3 + $0x60] sm:$0xff] %vm21, 0.0
    %51 = vst.msk [vmem:[#allocation3 + $0x68] sm:$0xff] %vm21, 0.0
    %52 = vst.msk [vmem:[#allocation3 + $0x70] sm:$0xff] %vm21, 0.0
    %53 = vst.msk [vmem:[#allocation3 + $0x78] sm:$0xff] %vm21, 0.0
    %54 = vst.msk [vmem:[#allocation4] sm:$0xff] %vm21, 0.0
    %55 = vst.msk [vmem:[#allocation4 + $0x8] sm:$0xff] %vm21, 0.0
    %56 = vst.msk [vmem:[#allocation4 + $0x10] sm:$0xff] %vm21, 0.0
    %57 = vst.msk [vmem:[#allocation4 + $0x18] sm:$0xff] %vm21, 0.0
    %58 = vst.msk [vmem:[#allocation4 + $0x20] sm:$0xff] %vm21, 0.0
    %59 = vst.msk [vmem:[#allocation4 + $0x28] sm:$0xff] %vm21, 0.0
    %60 = vst.msk [vmem:[#allocation4 + $0x30] sm:$0xff] %vm21, 0.0
    %61 = vst.msk [vmem:[#allocation4 + $0x38] sm:$0xff] %vm21, 0.0
    %62 = vst.msk [vmem:[#allocation4 + $0x40] sm:$0xff] %vm21, 0.0
    %63 = vst.msk [vmem:[#allocation4 + $0x48] sm:$0xff] %vm21, 0.0
    %64 = vst.msk [vmem:[#allocation4 + $0x50] sm:$0xff] %vm21, 0.0
    %65 = vst.msk [vmem:[#allocation4 + $0x58] sm:$0xff] %vm21, 0.0
    %66 = vst.msk [vmem:[#allocation4 + $0x60] sm:$0xff] %vm21, 0.0
    %67 = vst.msk [vmem:[#allocation4 + $0x68] sm:$0xff] %vm21, 0.0
    %68 = vst.msk [vmem:[#allocation4 + $0x70] sm:$0xff] %vm21, 0.0
    %69 = vst.msk [vmem:[#allocation4 + $0x78] sm:$0xff] %vm21, 0.0
    %70 = vst.msk [vmem:[#allocation5] sm:$0xff] %vm21, 0.0
    %71 = vst.msk [vmem:[#allocation5 + $0x8] sm:$0xff] %vm21, 0.0
    %72 = vst.msk [vmem:[#allocation5 + $0x10] sm:$0xff] %vm21, 0.0
    %73 = vst.msk [vmem:[#allocation5 + $0x18] sm:$0xff] %vm21, 0.0
    %74 = vst.msk [vmem:[#allocation5 + $0x20] sm:$0xff] %vm21, 0.0
    %75 = vst.msk [vmem:[#allocation5 + $0x28] sm:$0xff] %vm21, 0.0
    %76 = vst.msk [vmem:[#allocation5 + $0x30] sm:$0xff] %vm21, 0.0
    %77 = vst.msk [vmem:[#allocation5 + $0x38] sm:$0xff] %vm21, 0.0
    %78 = vst.msk [vmem:[#allocation5 + $0x40] sm:$0xff] %vm21, 0.0
    %79 = vst.msk [vmem:[#allocation5 + $0x48] sm:$0xff] %vm21, 0.0
    %80 = vst.msk [vmem:[#allocation5 + $0x50] sm:$0xff] %vm21, 0.0
    %81 = vst.msk [vmem:[#allocation5 + $0x58] sm:$0xff] %vm21, 0.0
    %82 = vst.msk [vmem:[#allocation5 + $0x60] sm:$0xff] %vm21, 0.0
    %83 = vst.msk [vmem:[#allocation5 + $0x68] sm:$0xff] %vm21, 0.0
    %84 = vst.msk [vmem:[#allocation5 + $0x70] sm:$0xff] %vm21, 0.0
    %85 = vst.msk [vmem:[#allocation5 + $0x78] sm:$0xff] %vm21, 0.0
  $region21: #{tpu_custom_call.1} parent=0 // pred_fallthru
    _
  %v86 = vld [vmem:[%s0] sm:$0xf]
  %v87 = vld [vmem:[%s0 + $0x4] sm:$0xf]
  %v88 = vld [vmem:[%s0 + $0x8] sm:$0xf]
  %v89 = vld [vmem:[%s0 + $0xc] sm:$0xf]
  %v90 = vld [vmem:[%s0 + $0x10] sm:$0xf]
  %v91 = vld [vmem:[%s0 + $0x14] sm:$0xf]
  %v92 = vld [vmem:[%s0 + $0x18] sm:$0xf]
  %v93 = vld [vmem:[%s0 + $0x1c] sm:$0xf]
  %v94 = vld [vmem:[%s0 + $0x20] sm:$0xf]
  %v95 = vld [vmem:[%s0 + $0x24] sm:$0xf]
  %v96 = vld [vmem:[%s0 + $0x28] sm:$0xf]
  %v97 = vld [vmem:[%s0 + $0x2c] sm:$0xf]
  %v98 = vld [vmem:[%s0 + $0x30] sm:$0xf]
  %v99 = vld [vmem:[%s0 + $0x34] sm:$0xf]
  %v100 = vld [vmem:[%s0 + $0x38] sm:$0xf]
  %v101 = vld [vmem:[%s0 + $0x3c] sm:$0xf]
  %v102 = vld [vmem:[%s1] sm:$0xf]
  %v103 = vld [vmem:[%s1 + $0x4] sm:$0xf]
  %v104 = vld [vmem:[%s1 + $0x8] sm:$0xf]
  %v105 = vld [vmem:[%s1 + $0xc] sm:$0xf]
  %v106 = vld [vmem:[%s1 + $0x10] sm:$0xf]
  %v107 = vld [vmem:[%s1 + $0x14] sm:$0xf]
  %v108 = vld [vmem:[%s1 + $0x18] sm:$0xf]
  %v109 = vld [vmem:[%s1 + $0x1c] sm:$0xf]
  %v110 = vld [vmem:[%s1 + $0x20] sm:$0xf]
  %v111 = vld [vmem:[%s1 + $0x24] sm:$0xf]
  %v112 = vld [vmem:[%s1 + $0x28] sm:$0xf]
  %v113 = vld [vmem:[%s1 + $0x2c] sm:$0xf]
  %v114 = vld [vmem:[%s1 + $0x30] sm:$0xf]
  %v115 = vld [vmem:[%s1 + $0x34] sm:$0xf]
  %v116 = vld [vmem:[%s1 + $0x38] sm:$0xf]
  %v117 = vld [vmem:[%s1 + $0x3c] sm:$0xf]
  %v134 = vunpack.c.l.b16 %v86
  %v135 = vunpack.c.l.b16 %v87
  %v136 = vunpack.c.l.b16 %v88
  %v137 = vunpack.c.l.b16 %v89
  %v138 = vunpack.c.l.b16 %v90
  %v139 = vunpack.c.l.b16 %v91
  %v140 = vunpack.c.l.b16 %v92
  %v141 = vunpack.c.l.b16 %v93
  %v142 = vunpack.c.l.b16 %v94
  %v143 = vunpack.c.l.b16 %v95
  %v144 = vunpack.c.l.b16 %v96
  %v145 = vunpack.c.l.b16 %v97
  %v146 = vunpack.c.l.b16 %v98
  %v147 = vunpack.c.l.b16 %v99
  %v148 = vunpack.c.l.b16 %v100
  %v149 = vunpack.c.l.b16 %v101
  %v150 = vpack.c.b16 %v135, %v134
  %v151 = vpack.c.b16 %v137, %v136
  %v152 = vpack.c.b16 %v139, %v138
  %v153 = vpack.c.b16 %v141, %v140
  %v154 = vpack.c.b16 %v143, %v142
  %v155 = vpack.c.b16 %v145, %v144
  %v156 = vpack.c.b16 %v147, %v146
  %v157 = vpack.c.b16 %v149, %v148
  %v182 = vunpack.c.l.b16 %v102
  %v183 = vunpack.c.l.b16 %v103
  %v184 = vunpack.c.l.b16 %v104
  %v185 = vunpack.c.l.b16 %v105
  %v186 = vunpack.c.l.b16 %v106
  %v187 = vunpack.c.l.b16 %v107
  %v188 = vunpack.c.l.b16 %v108
  %v189 = vunpack.c.l.b16 %v109
  %v190 = vunpack.c.l.b16 %v110
  %v191 = vunpack.c.l.b16 %v111
  %v192 = vunpack.c.l.b16 %v112
  %v193 = vunpack.c.l.b16 %v113
  %v194 = vunpack.c.l.b16 %v114
  %v195 = vunpack.c.l.b16 %v115
  %v196 = vunpack.c.l.b16 %v116
  %v197 = vunpack.c.l.b16 %v117
  %v198 = vpack.c.b16 %v183, %v182
  %v199 = vpack.c.b16 %v185, %v184
  %v200 = vpack.c.b16 %v187, %v186
  %v201 = vpack.c.b16 %v189, %v188
  %v202 = vpack.c.b16 %v191, %v190
  %v203 = vpack.c.b16 %v193, %v192
  %v204 = vpack.c.b16 %v195, %v194
  %v205 = vpack.c.b16 %v197, %v196
  %214 = vmatpush.bf16.xpose.msra.mxu0 %v205
  %215 = vmatpush.bf16.xpose.msra.mxu0 %v204
  %216 = vmatpush.bf16.xpose.msra.mxu0 %v203
  %217 = vmatpush.bf16.xpose.msra.mxu0 %v202
  %218 = vmatpush.bf16.xpose.msra.mxu0 %v201
  %219 = vmatpush.bf16.xpose.msra.mxu0 %v200
  %220 = vmatpush.bf16.xpose.msra.mxu0 %v199
  %221 = vmatpush.bf16.xpose.msra.mxu0 %v198
  %222 = vmatmul.bf16.gmra.mxu0 %v150
  %v223 = vpop.f32.mrf.mxu0
  %v224 = vadd.f32 0.0, %v223
  %v225 = vpop.f32.mrf.mxu0
  %v226 = vadd.f32 0.0, %v225
  %227 = vmatmul.bf16.gmra.mxu0 %v151
  %v228 = vpop.f32.mrf.mxu0
  %v229 = vadd.f32 0.0, %v228
  %v230 = vpop.f32.mrf.mxu0
  %v231 = vadd.f32 0.0, %v230
  %232 = vmatmul.bf16.gmra.mxu0 %v152
  %v233 = vpop.f32.mrf.mxu0
  %v234 = vadd.f32 0.0, %v233
  %v235 = vpop.f32.mrf.mxu0
  %v236 = vadd.f32 0.0, %v235
  %237 = vmatmul.bf16.gmra.mxu0 %v153
  %v238 = vpop.f32.mrf.mxu0
  %v239 = vadd.f32 0.0, %v238
  %v240 = vpop.f32.mrf.mxu0
  %v241 = vadd.f32 0.0, %v240
  %242 = vmatmul.bf16.gmra.mxu0 %v154
  %v243 = vpop.f32.mrf.mxu0
  %v244 = vadd.f32 0.0, %v243
  %v245 = vpop.f32.mrf.mxu0
  %v246 = vadd.f32 0.0, %v245
  %247 = vmatmul.bf16.gmra.mxu0 %v155
  %v248 = vpop.f32.mrf.mxu0
  %v249 = vadd.f32 0.0, %v248
  %v250 = vpop.f32.mrf.mxu0
  %v251 = vadd.f32 0.0, %v250
  %252 = vmatmul.bf16.gmra.mxu0 %v156
  %v253 = vpop.f32.mrf.mxu0
  %v254 = vadd.f32 0.0, %v253
  %v255 = vpop.f32.mrf.mxu0
  %v256 = vadd.f32 0.0, %v255
  %257 = vmatmul.bf16.gmra.mxu0 %v157
  %v258 = vpop.f32.mrf.mxu0
  %v259 = vadd.f32 0.0, %v258
  %v260 = vpop.f32.mrf.mxu0
  %v261 = vadd.f32 0.0, %v260
  %262 = vdwg.mxu0
  %v263 = vmul.f32 %v224, 14.285714
  %v264 = vmul.f32 %v226, 14.285714
  %v265 = vmul.f32 %v229, 14.285714
  %v266 = vmul.f32 %v231, 14.285714
  %v267 = vmul.f32 %v234, 14.285714
  %v268 = vmul.f32 %v236, 14.285714
  %v269 = vmul.f32 %v239, 14.285714
  %v270 = vmul.f32 %v241, 14.285714
  %v271 = vmul.f32 %v244, 14.285714
  %v272 = vmul.f32 %v246, 14.285714
  %v273 = vmul.f32 %v249, 14.285714
  %v274 = vmul.f32 %v251, 14.285714
  %v275 = vmul.f32 %v254, 14.285714
  %v276 = vmul.f32 %v256, 14.285714
  %v277 = vmul.f32 %v259, 14.285714
  %v278 = vmul.f32 %v261, 14.285714
  %s279 = smul.u32 0, 128
  %v280 = vlaneseq
  %v281 = vshrl.u32 %v280, 7
  %v282 = vadd.s32 %v281, 8
  %v283 = vadd.s32 %v281, 16
  %v284 = vadd.s32 %v281, 24
  %v285 = vadd.s32 %v281, 32
  %v286 = vadd.s32 %v281, 40
  %v287 = vadd.s32 %v281, 48
  %v288 = vadd.s32 %v281, 56
  %v289 = vadd.s32 %v281, 64
  %v290 = vadd.s32 %v281, 72
  %v291 = vadd.s32 %v281, 80
  %v292 = vadd.s32 %v281, 88
  %v293 = vadd.s32 %v281, 96
  %v294 = vadd.s32 %v281, 104
  %v295 = vadd.s32 %v281, 112
  %v296 = vadd.s32 %v281, 120
  %v297 = vstv %s279
  %v298 = vadd.s32 %v297, %v281
  %v299 = vadd.s32 %v297, %v282
  %v300 = vadd.s32 %v297, %v283
  %v301 = vadd.s32 %v297, %v284
  %v302 = vadd.s32 %v297, %v285
  %v303 = vadd.s32 %v297, %v286
  %v304 = vadd.s32 %v297, %v287
  %v305 = vadd.s32 %v297, %v288
  %v306 = vadd.s32 %v297, %v289
  %v307 = vadd.s32 %v297, %v290
  %v308 = vadd.s32 %v297, %v291
  %v309 = vadd.s32 %v297, %v292
  %v310 = vadd.s32 %v297, %v293
  %v311 = vadd.s32 %v297, %v294
  %v312 = vadd.s32 %v297, %v295
  %v313 = vadd.s32 %v297, %v296
  %s314 = smul.u32 0, 128
  %v315 = vlaneseq
  %v316 = vand.u32 %v315, 127
  %v317 = vstv %s314
  %v318 = vadd.s32 %v317, %v316
  %vm319 = vcmp.ne.s32.totalorder %v298, %v318
  %vm320 = vcmp.ne.s32.totalorder %v299, %v318
  %vm321 = vcmp.ne.s32.totalorder %v300, %v318
  %vm322 = vcmp.ne.s32.totalorder %v301, %v318
  %vm323 = vcmp.ne.s32.totalorder %v302, %v318
  %vm324 = vcmp.ne.s32.totalorder %v303, %v318
  %vm325 = vcmp.ne.s32.totalorder %v304, %v318
  %vm326 = vcmp.ne.s32.totalorder %v305, %v318
  %vm327 = vcmp.ne.s32.totalorder %v306, %v318
  %vm328 = vcmp.ne.s32.totalorder %v307, %v318
  %vm329 = vcmp.ne.s32.totalorder %v308, %v318
  %vm330 = vcmp.ne.s32.totalorder %v309, %v318
  %vm331 = vcmp.ne.s32.totalorder %v310, %v318
  %vm332 = vcmp.ne.s32.totalorder %v311, %v318
  %vm333 = vcmp.ne.s32.totalorder %v312, %v318
  %vm334 = vcmp.ne.s32.totalorder %v313, %v318
  %vm335 = vcmp.lt.s32.totalorder %v318, 16
  %vm336 = vmand %vm319, %vm335
  %vm337 = vmand %vm320, %vm335
  %vm338 = vmand %vm321, %vm335
  %vm339 = vmand %vm322, %vm335
  %vm340 = vmand %vm323, %vm335
  %vm341 = vmand %vm324, %vm335
  %vm342 = vmand %vm325, %vm335
  %vm343 = vmand %vm326, %vm335
  %vm344 = vmand %vm327, %vm335
  %vm345 = vmand %vm328, %vm335
  %vm346 = vmand %vm329, %vm335
  %vm347 = vmand %vm330, %vm335
  %vm348 = vmand %vm331, %vm335
  %vm349 = vmand %vm332, %vm335
  %vm350 = vmand %vm333, %vm335
  %vm351 = vmand %vm334, %vm335
  %v352 = vld [vmem:[%s2] sm:$0xff]
  %v353 = vld [vmem:[%s2 + $0x8] sm:$0xff]
  %v354 = vld [vmem:[%s2 + $0x10] sm:$0xff]
  %v355 = vld [vmem:[%s2 + $0x18] sm:$0xff]
  %v356 = vld [vmem:[%s2 + $0x20] sm:$0xff]
  %v357 = vld [vmem:[%s2 + $0x28] sm:$0xff]
  %v358 = vld [vmem:[%s2 + $0x30] sm:$0xff]
  %v359 = vld [vmem:[%s2 + $0x38] sm:$0xff]
  %v360 = vld [vmem:[%s2 + $0x40] sm:$0xff]
  %v361 = vld [vmem:[%s2 + $0x48] sm:$0xff]
  %v362 = vld [vmem:[%s2 + $0x50] sm:$0xff]
  %v363 = vld [vmem:[%s2 + $0x58] sm:$0xff]
  %v364 = vld [vmem:[%s2 + $0x60] sm:$0xff]
  %v365 = vld [vmem:[%s2 + $0x68] sm:$0xff]
  %v366 = vld [vmem:[%s2 + $0x70] sm:$0xff]
  %v367 = vld [vmem:[%s2 + $0x78] sm:$0xff]
  %v368 = vld [vmem:[%s3] sm:$0x1]
  %369 = vset.pattern.permute.xlu0 0
  %370 = vperm.xlu0 %369, %v352
  %v371 = vpop.permute.xlu0 %370
  %372 = vset.pattern.permute.xlu0 0
  %373 = vperm.xlu0 %372, %v353
  %v374 = vpop.permute.xlu0 %373
  %375 = vset.pattern.permute.xlu0 0
  %376 = vperm.xlu0 %375, %v354
  %v377 = vpop.permute.xlu0 %376
  %378 = vset.pattern.permute.xlu0 0
  %379 = vperm.xlu0 %378, %v355
  %v380 = vpop.permute.xlu0 %379
  %381 = vset.pattern.permute.xlu0 0
  %382 = vperm.xlu0 %381, %v356
  %v383 = vpop.permute.xlu0 %382
  %384 = vset.pattern.permute.xlu0 0
  %385 = vperm.xlu0 %384, %v357
  %v386 = vpop.permute.xlu0 %385
  %387 = vset.pattern.permute.xlu0 0
  %388 = vperm.xlu0 %387, %v358
  %v389 = vpop.permute.xlu0 %388
  %390 = vset.pattern.permute.xlu0 0
  %391 = vperm.xlu0 %390, %v359
  %v392 = vpop.permute.xlu0 %391
  %393 = vset.pattern.permute.xlu0 0
  %394 = vperm.xlu0 %393, %v360
  %v395 = vpop.permute.xlu0 %394
  %396 = vset.pattern.permute.xlu0 0
  %397 = vperm.xlu0 %396, %v361
  %v398 = vpop.permute.xlu0 %397
  %399 = vset.pattern.permute.xlu0 0
  %400 = vperm.xlu0 %399, %v362
  %v401 = vpop.permute.xlu0 %400
  %402 = vset.pattern.permute.xlu0 0
  %403 = vperm.xlu0 %402, %v363
  %v404 = vpop.permute.xlu0 %403
  %405 = vset.pattern.permute.xlu0 0
  %406 = vperm.xlu0 %405, %v364
  %v407 = vpop.permute.xlu0 %406
  %408 = vset.pattern.permute.xlu0 0
  %409 = vperm.xlu0 %408, %v365
  %v410 = vpop.permute.xlu0 %409
  %411 = vset.pattern.permute.xlu0 0
  %412 = vperm.xlu0 %411, %v366
  %v413 = vpop.permute.xlu0 %412
  %414 = vset.pattern.permute.xlu0 0
  %415 = vperm.xlu0 %414, %v367
  %v416 = vpop.permute.xlu0 %415
  %v417 = vperm.slane %v368, 0
  %vm418 = vcmp.eq.s32.totalorder %v371, %v417
  %vm419 = vcmp.eq.s32.totalorder %v374, %v417
  %vm420 = vcmp.eq.s32.totalorder %v377, %v417
  %vm421 = vcmp.eq.s32.totalorder %v380, %v417
  %vm422 = vcmp.eq.s32.totalorder %v383, %v417
  %vm423 = vcmp.eq.s32.totalorder %v386, %v417
  %vm424 = vcmp.eq.s32.totalorder %v389, %v417
  %vm425 = vcmp.eq.s32.totalorder %v392, %v417
  %vm426 = vcmp.eq.s32.totalorder %v395, %v417
  %vm427 = vcmp.eq.s32.totalorder %v398, %v417
  %vm428 = vcmp.eq.s32.totalorder %v401, %v417
  %vm429 = vcmp.eq.s32.totalorder %v404, %v417
  %vm430 = vcmp.eq.s32.totalorder %v407, %v417
  %vm431 = vcmp.eq.s32.totalorder %v410, %v417
  %vm432 = vcmp.eq.s32.totalorder %v413, %v417
  %vm433 = vcmp.eq.s32.totalorder %v416, %v417
  %vm434 = vmand %vm418, %vm336
  %vm435 = vmand %vm419, %vm337
  %vm436 = vmand %vm420, %vm338
  %vm437 = vmand %vm421, %vm339
  %vm438 = vmand %vm422, %vm340
  %vm439 = vmand %vm423, %vm341
  %vm440 = vmand %vm424, %vm342
  %vm441 = vmand %vm425, %vm343
  %vm442 = vmand %vm426, %vm344
  %vm443 = vmand %vm427, %vm345
  %vm444 = vmand %vm428, %vm346
  %vm445 = vmand %vm429, %vm347
  %vm446 = vmand %vm430, %vm348
  %vm447 = vmand %vm431, %vm349
  %vm448 = vmand %vm432, %vm350
  %vm449 = vmand %vm433, %vm351
  %v450 = vld [vmem:[#allocation2] sm:$0xff]
  %v451 = vld [vmem:[#allocation2 + $0x8] sm:$0xff]
  %v452 = vld [vmem:[#allocation2 + $0x10] sm:$0xff]
  %v453 = vld [vmem:[#allocation2 + $0x18] sm:$0xff]
  %v454 = vld [vmem:[#allocation2 + $0x20] sm:$0xff]
  %v455 = vld [vmem:[#allocation2 + $0x28] sm:$0xff]
  %v456 = vld [vmem:[#allocation2 + $0x30] sm:$0xff]
  %v457 = vld [vmem:[#allocation2 + $0x38] sm:$0xff]
  %v458 = vld [vmem:[#allocation2 + $0x40] sm:$0xff]
  %v459 = vld [vmem:[#allocation2 + $0x48] sm:$0xff]
  %v460 = vld [vmem:[#allocation2 + $0x50] sm:$0xff]
  %v461 = vld [vmem:[#allocation2 + $0x58] sm:$0xff]
  %v462 = vld [vmem:[#allocation2 + $0x60] sm:$0xff]
  %v463 = vld [vmem:[#allocation2 + $0x68] sm:$0xff]
  %v464 = vld [vmem:[#allocation2 + $0x70] sm:$0xff]
  %v465 = vld [vmem:[#allocation2 + $0x78] sm:$0xff]
  %466 = vmax.xlane.f32.xlu0 %v263
  %v467 = vpop.xlane.xlu0 %466
  %468 = vmax.xlane.f32.xlu0 %v264
  %v469 = vpop.xlane.xlu0 %468
  %470 = vmax.xlane.f32.xlu0 %v265
  %v471 = vpop.xlane.xlu0 %470
  %472 = vmax.xlane.f32.xlu0 %v266
  %v473 = vpop.xlane.xlu0 %472
  %474 = vmax.xlane.f32.xlu0 %v267
  %v475 = vpop.xlane.xlu0 %474
  %476 = vmax.xlane.f32.xlu0 %v268
  %v477 = vpop.xlane.xlu0 %476
  %478 = vmax.xlane.f32.xlu0 %v269
  %v479 = vpop.xlane.xlu0 %478
  %480 = vmax.xlane.f32.xlu0 %v270
  %v481 = vpop.xlane.xlu0 %480
  %482 = vmax.xlane.f32.xlu0 %v271
  %v483 = vpop.xlane.xlu0 %482
  %484 = vmax.xlane.f32.xlu0 %v272
  %v485 = vpop.xlane.xlu0 %484
  %486 = vmax.xlane.f32.xlu0 %v273
  %v487 = vpop.xlane.xlu0 %486
  %488 = vmax.xlane.f32.xlu0 %v274
  %v489 = vpop.xlane.xlu0 %488
  %490 = vmax.xlane.f32.xlu0 %v275
  %v491 = vpop.xlane.xlu0 %490
  %492 = vmax.xlane.f32.xlu0 %v276
  %v493 = vpop.xlane.xlu0 %492
  %494 = vmax.xlane.f32.xlu0 %v277
  %v495 = vpop.xlane.xlu0 %494
  %496 = vmax.xlane.f32.xlu0 %v278
  %v497 = vpop.xlane.xlu0 %496
  %v498 = vmax.f32 %v450, %v467
  %v499 = vmax.f32 %v451, %v469
  %v500 = vmax.f32 %v452, %v471
  %v501 = vmax.f32 %v453, %v473
  %v502 = vmax.f32 %v454, %v475
  %v503 = vmax.f32 %v455, %v477
  %v504 = vmax.f32 %v456, %v479
  %v505 = vmax.f32 %v457, %v481
  %v506 = vmax.f32 %v458, %v483
  %v507 = vmax.f32 %v459, %v485
  %v508 = vmax.f32 %v460, %v487
  %v509 = vmax.f32 %v461, %v489
  %v510 = vmax.f32 %v462, %v491
  %v511 = vmax.f32 %v463, %v493
  %v512 = vmax.f32 %v464, %v495
  %v513 = vmax.f32 %v465, %v497
  %v514 = vsub.f32 %v450, %v498
  %v515 = vsub.f32 %v451, %v499
  %v516 = vsub.f32 %v452, %v500
  %v517 = vsub.f32 %v453, %v501
  %v518 = vsub.f32 %v454, %v502
  %v519 = vsub.f32 %v455, %v503
  %v520 = vsub.f32 %v456, %v504
  %v521 = vsub.f32 %v457, %v505
  %v522 = vsub.f32 %v458, %v506
  %v523 = vsub.f32 %v459, %v507
  %v524 = vsub.f32 %v460, %v508
  %v525 = vsub.f32 %v461, %v509
  %v526 = vsub.f32 %v462, %v510
  %v527 = vsub.f32 %v463, %v511
  %v528 = vsub.f32 %v464, %v512
  %v529 = vsub.f32 %v465, %v513
  %v530 = vmul.f32 %v514, 1.442695
  %v531 = vpow.pop %v530
  %v532 = vmul.f32 %v515, 1.442695
  %v533 = vpow.pop %v532
  %v534 = vmul.f32 %v516, 1.442695
  %v535 = vpow.pop %v534
  %v536 = vmul.f32 %v517, 1.442695
  %v537 = vpow.pop %v536
  %v538 = vmul.f32 %v518, 1.442695
  %v539 = vpow.pop %v538
  %v540 = vmul.f32 %v519, 1.442695
  %v541 = vpow.pop %v540
  %v542 = vmul.f32 %v520, 1.442695
  %v543 = vpow.pop %v542
  %v544 = vmul.f32 %v521, 1.442695
  %v545 = vpow.pop %v544
  %v546 = vmul.f32 %v522, 1.442695
  %v547 = vpow.pop %v546
  %v548 = vmul.f32 %v523, 1.442695
  %v549 = vpow.pop %v548
  %v550 = vmul.f32 %v524, 1.442695
  %v551 = vpow.pop %v550
  %v552 = vmul.f32 %v525, 1.442695
  %v553 = vpow.pop %v552
  %v554 = vmul.f32 %v526, 1.442695
  %v555 = vpow.pop %v554
  %v556 = vmul.f32 %v527, 1.442695
  %v557 = vpow.pop %v556
  %v558 = vmul.f32 %v528, 1.442695
  %v559 = vpow.pop %v558
  %v560 = vmul.f32 %v529, 1.442695
  %v561 = vpow.pop %v560
  %563 = vset.pattern.permute.xlu0 0
  %564 = vperm.xlu0 %563, %v498
  %v565 = vpop.permute.xlu0 %564
  %568 = vset.pattern.permute.xlu0 0
  %569 = vperm.xlu0 %568, %v499
  %v570 = vpop.permute.xlu0 %569
  %573 = vset.pattern.permute.xlu0 0
  %574 = vperm.xlu0 %573, %v500
  %v575 = vpop.permute.xlu0 %574
  %578 = vset.pattern.permute.xlu0 0
  %579 = vperm.xlu0 %578, %v501
  %v580 = vpop.permute.xlu0 %579
  %583 = vset.pattern.permute.xlu0 0
  %584 = vperm.xlu0 %583, %v502
  %v585 = vpop.permute.xlu0 %584
  %588 = vset.pattern.permute.xlu0 0
  %589 = vperm.xlu0 %588, %v503
  %v590 = vpop.permute.xlu0 %589
  %593 = vset.pattern.permute.xlu0 0
  %594 = vperm.xlu0 %593, %v504
  %v595 = vpop.permute.xlu0 %594
  %598 = vset.pattern.permute.xlu0 0
  %599 = vperm.xlu0 %598, %v505
  %v600 = vpop.permute.xlu0 %599
  %603 = vset.pattern.permute.xlu0 0
  %604 = vperm.xlu0 %603, %v506
  %v605 = vpop.permute.xlu0 %604
  %608 = vset.pattern.permute.xlu0 0
  %609 = vperm.xlu0 %608, %v507
  %v610 = vpop.permute.xlu0 %609
  %613 = vset.pattern.permute.xlu0 0
  %614 = vperm.xlu0 %613, %v508
  %v615 = vpop.permute.xlu0 %614
  %618 = vset.pattern.permute.xlu0 0
  %619 = vperm.xlu0 %618, %v509
  %v620 = vpop.permute.xlu0 %619
  %623 = vset.pattern.permute.xlu0 0
  %624 = vperm.xlu0 %623, %v510
  %v625 = vpop.permute.xlu0 %624
  %628 = vset.pattern.permute.xlu0 0
  %629 = vperm.xlu0 %628, %v511
  %v630 = vpop.permute.xlu0 %629
  %633 = vset.pattern.permute.xlu0 0
  %634 = vperm.xlu0 %633, %v512
  %v635 = vpop.permute.xlu0 %634
  %638 = vset.pattern.permute.xlu0 0
  %639 = vperm.xlu0 %638, %v513
  %v640 = vpop.permute.xlu0 %639
  %v642 = vsub.f32 %v263, %v565
  %v643 = vsub.f32 %v264, %v570
  %v644 = vsub.f32 %v265, %v575
  %v645 = vsub.f32 %v266, %v580
  %v646 = vsub.f32 %v267, %v585
  %v647 = vsub.f32 %v268, %v590
  %v648 = vsub.f32 %v269, %v595
  %v649 = vsub.f32 %v270, %v600
  %v650 = vsub.f32 %v271, %v605
  %v651 = vsub.f32 %v272, %v610
  %v652 = vsub.f32 %v273, %v615
  %v653 = vsub.f32 %v274, %v620
  %v654 = vsub.f32 %v275, %v625
  %v655 = vsub.f32 %v276, %v630
  %v656 = vsub.f32 %v277, %v635
  %v657 = vsub.f32 %v278, %v640
  %v658 = vmul.f32 %v642, 1.442695
  %v659 = vpow.pop %v658
  %v660 = vmul.f32 %v643, 1.442695
  %v661 = vpow.pop %v660
  %v662 = vmul.f32 %v644, 1.442695
  %v663 = vpow.pop %v662
  %v664 = vmul.f32 %v645, 1.442695
  %v665 = vpow.pop %v664
  %v666 = vmul.f32 %v646, 1.442695
  %v667 = vpow.pop %v666
  %v668 = vmul.f32 %v647, 1.442695
  %v669 = vpow.pop %v668
  %v670 = vmul.f32 %v648, 1.442695
  %v671 = vpow.pop %v670
  %v672 = vmul.f32 %v649, 1.442695
  %v673 = vpow.pop %v672
  %v674 = vmul.f32 %v650, 1.442695
  %v675 = vpow.pop %v674
  %v676 = vmul.f32 %v651, 1.442695
  %v677 = vpow.pop %v676
  %v678 = vmul.f32 %v652, 1.442695
  %v679 = vpow.pop %v678
  %v680 = vmul.f32 %v653, 1.442695
  %v681 = vpow.pop %v680
  %v682 = vmul.f32 %v654, 1.442695
  %v683 = vpow.pop %v682
  %v684 = vmul.f32 %v655, 1.442695
  %v685 = vpow.pop %v684
  %v686 = vmul.f32 %v656, 1.442695
  %v687 = vpow.pop %v686
  %v688 = vmul.f32 %v657, 1.442695
  %v689 = vpow.pop %v688
  %v690 = vsel %vm336, %v659, 0.0
  %v691 = vsel %vm337, %v661, 0.0
  %v692 = vsel %vm338, %v663, 0.0
  %v693 = vsel %vm339, %v665, 0.0
  %v694 = vsel %vm340, %v667, 0.0
  %v695 = vsel %vm341, %v669, 0.0
  %v696 = vsel %vm342, %v671, 0.0
  %v697 = vsel %vm343, %v673, 0.0
  %v698 = vsel %vm344, %v675, 0.0
  %v699 = vsel %vm345, %v677, 0.0
  %v700 = vsel %vm346, %v679, 0.0
  %v701 = vsel %vm347, %v681, 0.0
  %v702 = vsel %vm348, %v683, 0.0
  %v703 = vsel %vm349, %v685, 0.0
  %v704 = vsel %vm350, %v687, 0.0
  %v705 = vsel %vm351, %v689, 0.0
  %v706 = vld [vmem:[#allocation3] sm:$0xff]
  %v707 = vld [vmem:[#allocation3 + $0x8] sm:$0xff]
  %v708 = vld [vmem:[#allocation3 + $0x10] sm:$0xff]
  %v709 = vld [vmem:[#allocation3 + $0x18] sm:$0xff]
  %v710 = vld [vmem:[#allocation3 + $0x20] sm:$0xff]
  %v711 = vld [vmem:[#allocation3 + $0x28] sm:$0xff]
  %v712 = vld [vmem:[#allocation3 + $0x30] sm:$0xff]
  %v713 = vld [vmem:[#allocation3 + $0x38] sm:$0xff]
  %v714 = vld [vmem:[#allocation3 + $0x40] sm:$0xff]
  %v715 = vld [vmem:[#allocation3 + $0x48] sm:$0xff]
  %v716 = vld [vmem:[#allocation3 + $0x50] sm:$0xff]
  %v717 = vld [vmem:[#allocation3 + $0x58] sm:$0xff]
  %v718 = vld [vmem:[#allocation3 + $0x60] sm:$0xff]
  %v719 = vld [vmem:[#allocation3 + $0x68] sm:$0xff]
  %v720 = vld [vmem:[#allocation3 + $0x70] sm:$0xff]
  %v721 = vld [vmem:[#allocation3 + $0x78] sm:$0xff]
  %v722 = vmul.f32 %v531, %v706
  %v723 = vmul.f32 %v533, %v707
  %v724 = vmul.f32 %v535, %v708
  %v725 = vmul.f32 %v537, %v709
  %v726 = vmul.f32 %v539, %v710
  %v727 = vmul.f32 %v541, %v711
  %v728 = vmul.f32 %v543, %v712
  %v729 = vmul.f32 %v545, %v713
  %v730 = vmul.f32 %v547, %v714
  %v731 = vmul.f32 %v549, %v715
  %v732 = vmul.f32 %v551, %v716
  %v733 = vmul.f32 %v553, %v717
  %v734 = vmul.f32 %v555, %v718
  %v735 = vmul.f32 %v557, %v719
  %v736 = vmul.f32 %v559, %v720
  %v737 = vmul.f32 %v561, %v721
  %738 = vadd.xlane.f32.xlu0 %v690
  %v739 = vpop.xlane.xlu0 %738
  %740 = vadd.xlane.f32.xlu0 %v691
  %v741 = vpop.xlane.xlu0 %740
  %742 = vadd.xlane.f32.xlu0 %v692
  %v743 = vpop.xlane.xlu0 %742
  %744 = vadd.xlane.f32.xlu0 %v693
  %v745 = vpop.xlane.xlu0 %744
  %746 = vadd.xlane.f32.xlu0 %v694
  %v747 = vpop.xlane.xlu0 %746
  %748 = vadd.xlane.f32.xlu0 %v695
  %v749 = vpop.xlane.xlu0 %748
  %750 = vadd.xlane.f32.xlu0 %v696
  %v751 = vpop.xlane.xlu0 %750
  %752 = vadd.xlane.f32.xlu0 %v697
  %v753 = vpop.xlane.xlu0 %752
  %754 = vadd.xlane.f32.xlu0 %v698
  %v755 = vpop.xlane.xlu0 %754
  %756 = vadd.xlane.f32.xlu0 %v699
  %v757 = vpop.xlane.xlu0 %756
  %758 = vadd.xlane.f32.xlu0 %v700
  %v759 = vpop.xlane.xlu0 %758
  %760 = vadd.xlane.f32.xlu0 %v701
  %v761 = vpop.xlane.xlu0 %760
  %762 = vadd.xlane.f32.xlu0 %v702
  %v763 = vpop.xlane.xlu0 %762
  %764 = vadd.xlane.f32.xlu0 %v703
  %v765 = vpop.xlane.xlu0 %764
  %766 = vadd.xlane.f32.xlu0 %v704
  %v767 = vpop.xlane.xlu0 %766
  %768 = vadd.xlane.f32.xlu0 %v705
  %v769 = vpop.xlane.xlu0 %768
  %v770 = vadd.f32 %v722, %v739
  %v771 = vadd.f32 %v723, %v741
  %v772 = vadd.f32 %v724, %v743
  %v773 = vadd.f32 %v725, %v745
  %v774 = vadd.f32 %v726, %v747
  %v775 = vadd.f32 %v727, %v749
  %v776 = vadd.f32 %v728, %v751
  %v777 = vadd.f32 %v729, %v753
  %v778 = vadd.f32 %v730, %v755
  %v779 = vadd.f32 %v731, %v757
  %v780 = vadd.f32 %v732, %v759
  %v781 = vadd.f32 %v733, %v761
  %v782 = vadd.f32 %v734, %v763
  %v783 = vadd.f32 %v735, %v765
  %v784 = vadd.f32 %v736, %v767
  %v785 = vadd.f32 %v737, %v769
  %vm786 = vcmask 7168
  %787 = vst.msk [vmem:[#allocation3] sm:$0xff] %vm786, %v770
  %788 = vst.msk [vmem:[#allocation3 + $0x8] sm:$0xff] %vm786, %v771
  %789 = vst.msk [vmem:[#allocation3 + $0x10] sm:$0xff] %vm786, %v772
  %790 = vst.msk [vmem:[#allocation3 + $0x18] sm:$0xff] %vm786, %v773
  %791 = vst.msk [vmem:[#allocation3 + $0x20] sm:$0xff] %vm786, %v774
  %792 = vst.msk [vmem:[#allocation3 + $0x28] sm:$0xff] %vm786, %v775
  %793 = vst.msk [vmem:[#allocation3 + $0x30] sm:$0xff] %vm786, %v776
  %794 = vst.msk [vmem:[#allocation3 + $0x38] sm:$0xff] %vm786, %v777
  %795 = vst.msk [vmem:[#allocation3 + $0x40] sm:$0xff] %vm786, %v778
  %796 = vst.msk [vmem:[#allocation3 + $0x48] sm:$0xff] %vm786, %v779
  %797 = vst.msk [vmem:[#allocation3 + $0x50] sm:$0xff] %vm786, %v780
  %798 = vst.msk [vmem:[#allocation3 + $0x58] sm:$0xff] %vm786, %v781
  %799 = vst.msk [vmem:[#allocation3 + $0x60] sm:$0xff] %vm786, %v782
  %800 = vst.msk [vmem:[#allocation3 + $0x68] sm:$0xff] %vm786, %v783
  %801 = vst.msk [vmem:[#allocation3 + $0x70] sm:$0xff] %vm786, %v784
  %802 = vst.msk [vmem:[#allocation3 + $0x78] sm:$0xff] %vm786, %v785
  %803 = vst.msk [vmem:[#allocation2] sm:$0xff] %vm786, %v498
  %804 = vst.msk [vmem:[#allocation2 + $0x8] sm:$0xff] %vm786, %v499
  %805 = vst.msk [vmem:[#allocation2 + $0x10] sm:$0xff] %vm786, %v500
  %806 = vst.msk [vmem:[#allocation2 + $0x18] sm:$0xff] %vm786, %v501
  %807 = vst.msk [vmem:[#allocation2 + $0x20] sm:$0xff] %vm786, %v502
  %808 = vst.msk [vmem:[#allocation2 + $0x28] sm:$0xff] %vm786, %v503
  %809 = vst.msk [vmem:[#allocation2 + $0x30] sm:$0xff] %vm786, %v504
  %810 = vst.msk [vmem:[#allocation2 + $0x38] sm:$0xff] %vm786, %v505
  %811 = vst.msk [vmem:[#allocation2 + $0x40] sm:$0xff] %vm786, %v506
  %812 = vst.msk [vmem:[#allocation2 + $0x48] sm:$0xff] %vm786, %v507
  %813 = vst.msk [vmem:[#allocation2 + $0x50] sm:$0xff] %vm786, %v508
  %814 = vst.msk [vmem:[#allocation2 + $0x58] sm:$0xff] %vm786, %v509
  %815 = vst.msk [vmem:[#allocation2 + $0x60] sm:$0xff] %vm786, %v510
  %816 = vst.msk [vmem:[#allocation2 + $0x68] sm:$0xff] %vm786, %v511
  %817 = vst.msk [vmem:[#allocation2 + $0x70] sm:$0xff] %vm786, %v512
  %818 = vst.msk [vmem:[#allocation2 + $0x78] sm:$0xff] %vm786, %v513
  %v819 = vld [vmem:[#allocation4] sm:$0xff]
  %v820 = vld [vmem:[#allocation4 + $0x8] sm:$0xff]
  %v821 = vld [vmem:[#allocation4 + $0x10] sm:$0xff]
  %v822 = vld [vmem:[#allocation4 + $0x18] sm:$0xff]
  %v823 = vld [vmem:[#allocation4 + $0x20] sm:$0xff]
  %v824 = vld [vmem:[#allocation4 + $0x28] sm:$0xff]
  %v825 = vld [vmem:[#allocation4 + $0x30] sm:$0xff]
  %v826 = vld [vmem:[#allocation4 + $0x38] sm:$0xff]
  %v827 = vld [vmem:[#allocation4 + $0x40] sm:$0xff]
  %v828 = vld [vmem:[#allocation4 + $0x48] sm:$0xff]
  %v829 = vld [vmem:[#allocation4 + $0x50] sm:$0xff]
  %v830 = vld [vmem:[#allocation4 + $0x58] sm:$0xff]
  %v831 = vld [vmem:[#allocation4 + $0x60] sm:$0xff]
  %v832 = vld [vmem:[#allocation4 + $0x68] sm:$0xff]
  %v833 = vld [vmem:[#allocation4 + $0x70] sm:$0xff]
  %v834 = vld [vmem:[#allocation4 + $0x78] sm:$0xff]
  %v835 = vsel %vm434, %v263, 0.0
  %v836 = vsel %vm435, %v264, 0.0
  %v837 = vsel %vm436, %v265, 0.0
  %v838 = vsel %vm437, %v266, 0.0
  %v839 = vsel %vm438, %v267, 0.0
  %v840 = vsel %vm439, %v268, 0.0
  %v841 = vsel %vm440, %v269, 0.0
  %v842 = vsel %vm441, %v270, 0.0
  %v843 = vsel %vm442, %v271, 0.0
  %v844 = vsel %vm443, %v272, 0.0
  %v845 = vsel %vm444, %v273, 0.0
  %v846 = vsel %vm445, %v274, 0.0
  %v847 = vsel %vm446, %v275, 0.0
  %v848 = vsel %vm447, %v276, 0.0
  %v849 = vsel %vm448, %v277, 0.0
  %v850 = vsel %vm449, %v278, 0.0
  %851 = vadd.xlane.f32.xlu0 %v835
  %v852 = vpop.xlane.xlu0 %851
  %853 = vadd.xlane.f32.xlu0 %v836
  %v854 = vpop.xlane.xlu0 %853
  %855 = vadd.xlane.f32.xlu0 %v837
  %v856 = vpop.xlane.xlu0 %855
  %857 = vadd.xlane.f32.xlu0 %v838
  %v858 = vpop.xlane.xlu0 %857
  %859 = vadd.xlane.f32.xlu0 %v839
  %v860 = vpop.xlane.xlu0 %859
  %861 = vadd.xlane.f32.xlu0 %v840
  %v862 = vpop.xlane.xlu0 %861
  %863 = vadd.xlane.f32.xlu0 %v841
  %v864 = vpop.xlane.xlu0 %863
  %865 = vadd.xlane.f32.xlu0 %v842
  %v866 = vpop.xlane.xlu0 %865
  %867 = vadd.xlane.f32.xlu0 %v843
  %v868 = vpop.xlane.xlu0 %867
  %869 = vadd.xlane.f32.xlu0 %v844
  %v870 = vpop.xlane.xlu0 %869
  %871 = vadd.xlane.f32.xlu0 %v845
  %v872 = vpop.xlane.xlu0 %871
  %873 = vadd.xlane.f32.xlu0 %v846
  %v874 = vpop.xlane.xlu0 %873
  %875 = vadd.xlane.f32.xlu0 %v847
  %v876 = vpop.xlane.xlu0 %875
  %877 = vadd.xlane.f32.xlu0 %v848
  %v878 = vpop.xlane.xlu0 %877
  %879 = vadd.xlane.f32.xlu0 %v849
  %v880 = vpop.xlane.xlu0 %879
  %881 = vadd.xlane.f32.xlu0 %v850
  %v882 = vpop.xlane.xlu0 %881
  %v883 = vadd.f32 %v819, %v852
  %v884 = vadd.f32 %v820, %v854
  %v885 = vadd.f32 %v821, %v856
  %v886 = vadd.f32 %v822, %v858
  %v887 = vadd.f32 %v823, %v860
  %v888 = vadd.f32 %v824, %v862
  %v889 = vadd.f32 %v825, %v864
  %v890 = vadd.f32 %v826, %v866
  %v891 = vadd.f32 %v827, %v868
  %v892 = vadd.f32 %v828, %v870
  %v893 = vadd.f32 %v829, %v872
  %v894 = vadd.f32 %v830, %v874
  %v895 = vadd.f32 %v831, %v876
  %v896 = vadd.f32 %v832, %v878
  %v897 = vadd.f32 %v833, %v880
  %v898 = vadd.f32 %v834, %v882
  %899 = vst.msk [vmem:[#allocation4] sm:$0xff] %vm786, %v883
  %900 = vst.msk [vmem:[#allocation4 + $0x8] sm:$0xff] %vm786, %v884
  %901 = vst.msk [vmem:[#allocation4 + $0x10] sm:$0xff] %vm786, %v885
  %902 = vst.msk [vmem:[#allocation4 + $0x18] sm:$0xff] %vm786, %v886
  %903 = vst.msk [vmem:[#allocation4 + $0x20] sm:$0xff] %vm786, %v887
  %904 = vst.msk [vmem:[#allocation4 + $0x28] sm:$0xff] %vm786, %v888
  %905 = vst.msk [vmem:[#allocation4 + $0x30] sm:$0xff] %vm786, %v889
  %906 = vst.msk [vmem:[#allocation4 + $0x38] sm:$0xff] %vm786, %v890
  %907 = vst.msk [vmem:[#allocation4 + $0x40] sm:$0xff] %vm786, %v891
  %908 = vst.msk [vmem:[#allocation4 + $0x48] sm:$0xff] %vm786, %v892
  %909 = vst.msk [vmem:[#allocation4 + $0x50] sm:$0xff] %vm786, %v893
  %910 = vst.msk [vmem:[#allocation4 + $0x58] sm:$0xff] %vm786, %v894
  %911 = vst.msk [vmem:[#allocation4 + $0x60] sm:$0xff] %vm786, %v895
  %912 = vst.msk [vmem:[#allocation4 + $0x68] sm:$0xff] %vm786, %v896
  %913 = vst.msk [vmem:[#allocation4 + $0x70] sm:$0xff] %vm786, %v897
  %914 = vst.msk [vmem:[#allocation4 + $0x78] sm:$0xff] %vm786, %v898
  %v915 = vld [vmem:[#allocation5] sm:$0xff]
  %v916 = vld [vmem:[#allocation5 + $0x8] sm:$0xff]
  %v917 = vld [vmem:[#allocation5 + $0x10] sm:$0xff]
  %v918 = vld [vmem:[#allocation5 + $0x18] sm:$0xff]
  %v919 = vld [vmem:[#allocation5 + $0x20] sm:$0xff]
  %v920 = vld [vmem:[#allocation5 + $0x28] sm:$0xff]
  %v921 = vld [vmem:[#allocation5 + $0x30] sm:$0xff]
  %v922 = vld [vmem:[#allocation5 + $0x38] sm:$0xff]
  %v923 = vld [vmem:[#allocation5 + $0x40] sm:$0xff]
  %v924 = vld [vmem:[#allocation5 + $0x48] sm:$0xff]
  %v925 = vld [vmem:[#allocation5 + $0x50] sm:$0xff]
  %v926 = vld [vmem:[#allocation5 + $0x58] sm:$0xff]
  %v927 = vld [vmem:[#allocation5 + $0x60] sm:$0xff]
  %v928 = vld [vmem:[#allocation5 + $0x68] sm:$0xff]
  %v929 = vld [vmem:[#allocation5 + $0x70] sm:$0xff]
  %v930 = vld [vmem:[#allocation5 + $0x78] sm:$0xff]
  %v931 = vsel %vm434, 1, 0
  %v932 = vsel %vm435, 1, 0
  %v933 = vsel %vm436, 1, 0
  %v934 = vsel %vm437, 1, 0
  %v935 = vsel %vm438, 1, 0
  %v936 = vsel %vm439, 1, 0
  %v937 = vsel %vm440, 1, 0
  %v938 = vsel %vm441, 1, 0
  %v939 = vsel %vm442, 1, 0
  %v940 = vsel %vm443, 1, 0
  %v941 = vsel %vm444, 1, 0
  %v942 = vsel %vm445, 1, 0
  %v943 = vsel %vm446, 1, 0
  %v944 = vsel %vm447, 1, 0
  %v945 = vsel %vm448, 1, 0
  %v946 = vsel %vm449, 1, 0
  %v947 = vcvt.s32.f32 %v931
  %v948 = vcvt.s32.f32 %v932
  %v949 = vcvt.s32.f32 %v933
  %v950 = vcvt.s32.f32 %v934
  %v951 = vcvt.s32.f32 %v935
  %v952 = vcvt.s32.f32 %v936
  %v953 = vcvt.s32.f32 %v937
  %v954 = vcvt.s32.f32 %v938
  %v955 = vcvt.s32.f32 %v939
  %v956 = vcvt.s32.f32 %v940
  %v957 = vcvt.s32.f32 %v941
  %v958 = vcvt.s32.f32 %v942
  %v959 = vcvt.s32.f32 %v943
  %v960 = vcvt.s32.f32 %v944
  %v961 = vcvt.s32.f32 %v945
  %v962 = vcvt.s32.f32 %v946
  %963 = vadd.xlane.f32.xlu0 %v947
  %v964 = vpop.xlane.xlu0 %963
  %965 = vadd.xlane.f32.xlu0 %v948
  %v966 = vpop.xlane.xlu0 %965
  %967 = vadd.xlane.f32.xlu0 %v949
  %v968 = vpop.xlane.xlu0 %967
  %969 = vadd.xlane.f32.xlu0 %v950
  %v970 = vpop.xlane.xlu0 %969
  %971 = vadd.xlane.f32.xlu0 %v951
  %v972 = vpop.xlane.xlu0 %971
  %973 = vadd.xlane.f32.xlu0 %v952
  %v974 = vpop.xlane.xlu0 %973
  %975 = vadd.xlane.f32.xlu0 %v953
  %v976 = vpop.xlane.xlu0 %975
  %977 = vadd.xlane.f32.xlu0 %v954
  %v978 = vpop.xlane.xlu0 %977
  %979 = vadd.xlane.f32.xlu0 %v955
  %v980 = vpop.xlane.xlu0 %979
  %981 = vadd.xlane.f32.xlu0 %v956
  %v982 = vpop.xlane.xlu0 %981
  %983 = vadd.xlane.f32.xlu0 %v957
  %v984 = vpop.xlane.xlu0 %983
  %985 = vadd.xlane.f32.xlu0 %v958
  %v986 = vpop.xlane.xlu0 %985
  %987 = vadd.xlane.f32.xlu0 %v959
  %v988 = vpop.xlane.xlu0 %987
  %989 = vadd.xlane.f32.xlu0 %v960
  %v990 = vpop.xlane.xlu0 %989
  %991 = vadd.xlane.f32.xlu0 %v961
  %v992 = vpop.xlane.xlu0 %991
  %993 = vadd.xlane.f32.xlu0 %v962
  %v994 = vpop.xlane.xlu0 %993
  %v995 = vadd.f32 %v915, %v964
  %v996 = vadd.f32 %v916, %v966
  %v997 = vadd.f32 %v917, %v968
  %v998 = vadd.f32 %v918, %v970
  %v999 = vadd.f32 %v919, %v972
  %v1000 = vadd.f32 %v920, %v974
  %v1001 = vadd.f32 %v921, %v976
  %v1002 = vadd.f32 %v922, %v978
  %v1003 = vadd.f32 %v923, %v980
  %v1004 = vadd.f32 %v924, %v982
  %v1005 = vadd.f32 %v925, %v984
  %v1006 = vadd.f32 %v926, %v986
  %v1007 = vadd.f32 %v927, %v988
  %v1008 = vadd.f32 %v928, %v990
  %v1009 = vadd.f32 %v929, %v992
  %v1010 = vadd.f32 %v930, %v994
  %1011 = vst.msk [vmem:[#allocation5] sm:$0xff] %vm786, %v995
  %1012 = vst.msk [vmem:[#allocation5 + $0x8] sm:$0xff] %vm786, %v996
  %1013 = vst.msk [vmem:[#allocation5 + $0x10] sm:$0xff] %vm786, %v997
  %1014 = vst.msk [vmem:[#allocation5 + $0x18] sm:$0xff] %vm786, %v998
  %1015 = vst.msk [vmem:[#allocation5 + $0x20] sm:$0xff] %vm786, %v999
  %1016 = vst.msk [vmem:[#allocation5 + $0x28] sm:$0xff] %vm786, %v1000
  %1017 = vst.msk [vmem:[#allocation5 + $0x30] sm:$0xff] %vm786, %v1001
  %1018 = vst.msk [vmem:[#allocation5 + $0x38] sm:$0xff] %vm786, %v1002
  %1019 = vst.msk [vmem:[#allocation5 + $0x40] sm:$0xff] %vm786, %v1003
  %1020 = vst.msk [vmem:[#allocation5 + $0x48] sm:$0xff] %vm786, %v1004
  %1021 = vst.msk [vmem:[#allocation5 + $0x50] sm:$0xff] %vm786, %v1005
  %1022 = vst.msk [vmem:[#allocation5 + $0x58] sm:$0xff] %vm786, %v1006
  %1023 = vst.msk [vmem:[#allocation5 + $0x60] sm:$0xff] %vm786, %v1007
  %1024 = vst.msk [vmem:[#allocation5 + $0x68] sm:$0xff] %vm786, %v1008
  %1025 = vst.msk [vmem:[#allocation5 + $0x70] sm:$0xff] %vm786, %v1009
  %1026 = vst.msk [vmem:[#allocation5 + $0x78] sm:$0xff] %vm786, %v1010
  // Predicated region
  $region22: #{tpu_custom_call.1} parent=0 // pred_check
    %p1027 = pneg %p17
  $region23: #{tpu_custom_call.1} parent=0 // pred_check_branch
    %1029 = sbr.rel (%p1027) target = $region25
  $region24: #{tpu_custom_call.1} parent=0 // pred_region
    %v1030 = vld [vmem:[#allocation2] sm:$0xff]
    %v1031 = vld [vmem:[#allocation2 + $0x8] sm:$0xff]
    %v1032 = vld [vmem:[#allocation2 + $0x10] sm:$0xff]
    %v1033 = vld [vmem:[#allocation2 + $0x18] sm:$0xff]
    %v1034 = vld [vmem:[#allocation2 + $0x20] sm:$0xff]
    %v1035 = vld [vmem:[#allocation2 + $0x28] sm:$0xff]
    %v1036 = vld [vmem:[#allocation2 + $0x30] sm:$0xff]
    %v1037 = vld [vmem:[#allocation2 + $0x38] sm:$0xff]
    %v1038 = vld [vmem:[#allocation2 + $0x40] sm:$0xff]
    %v1039 = vld [vmem:[#allocation2 + $0x48] sm:$0xff]
    %v1040 = vld [vmem:[#allocation2 + $0x50] sm:$0xff]
    %v1041 = vld [vmem:[#allocation2 + $0x58] sm:$0xff]
    %v1042 = vld [vmem:[#allocation2 + $0x60] sm:$0xff]
    %v1043 = vld [vmem:[#allocation2 + $0x68] sm:$0xff]
    %v1044 = vld [vmem:[#allocation2 + $0x70] sm:$0xff]
    %v1045 = vld [vmem:[#allocation2 + $0x78] sm:$0xff]
    %v1046 = vld [vmem:[#allocation3] sm:$0xff]
    %v1047 = vld [vmem:[#allocation3 + $0x8] sm:$0xff]
    %v1048 = vld [vmem:[#allocation3 + $0x10] sm:$0xff]
    %v1049 = vld [vmem:[#allocation3 + $0x18] sm:$0xff]
    %v1050 = vld [vmem:[#allocation3 + $0x20] sm:$0xff]
    %v1051 = vld [vmem:[#allocation3 + $0x28] sm:$0xff]
    %v1052 = vld [vmem:[#allocation3 + $0x30] sm:$0xff]
    %v1053 = vld [vmem:[#allocation3 + $0x38] sm:$0xff]
    %v1054 = vld [vmem:[#allocation3 + $0x40] sm:$0xff]
    %v1055 = vld [vmem:[#allocation3 + $0x48] sm:$0xff]
    %v1056 = vld [vmem:[#allocation3 + $0x50] sm:$0xff]
    %v1057 = vld [vmem:[#allocation3 + $0x58] sm:$0xff]
    %v1058 = vld [vmem:[#allocation3 + $0x60] sm:$0xff]
    %v1059 = vld [vmem:[#allocation3 + $0x68] sm:$0xff]
    %v1060 = vld [vmem:[#allocation3 + $0x70] sm:$0xff]
    %v1061 = vld [vmem:[#allocation3 + $0x78] sm:$0xff]
    %v1062 = vlog2.pop %v1046
    %v1063 = vmul.f32 %v1062, 0.6931472
    %v1064 = vlog2.pop %v1047
    %v1065 = vmul.f32 %v1064, 0.6931472
    %v1066 = vlog2.pop %v1048
    %v1067 = vmul.f32 %v1066, 0.6931472
    %v1068 = vlog2.pop %v1049
    %v1069 = vmul.f32 %v1068, 0.6931472
    %v1070 = vlog2.pop %v1050
    %v1071 = vmul.f32 %v1070, 0.6931472
    %v1072 = vlog2.pop %v1051
    %v1073 = vmul.f32 %v1072, 0.6931472
    %v1074 = vlog2.pop %v1052
    %v1075 = vmul.f32 %v1074, 0.6931472
    %v1076 = vlog2.pop %v1053
    %v1077 = vmul.f32 %v1076, 0.6931472
    %v1078 = vlog2.pop %v1054
    %v1079 = vmul.f32 %v1078, 0.6931472
    %v1080 = vlog2.pop %v1055
    %v1081 = vmul.f32 %v1080, 0.6931472
    %v1082 = vlog2.pop %v1056
    %v1083 = vmul.f32 %v1082, 0.6931472
    %v1084 = vlog2.pop %v1057
    %v1085 = vmul.f32 %v1084, 0.6931472
    %v1086 = vlog2.pop %v1058
    %v1087 = vmul.f32 %v1086, 0.6931472
    %v1088 = vlog2.pop %v1059
    %v1089 = vmul.f32 %v1088, 0.6931472
    %v1090 = vlog2.pop %v1060
    %v1091 = vmul.f32 %v1090, 0.6931472
    %v1092 = vlog2.pop %v1061
    %v1093 = vmul.f32 %v1092, 0.6931472
    %v1094 = vadd.f32 %v1030, %v1063
    %v1095 = vadd.f32 %v1031, %v1065
    %v1096 = vadd.f32 %v1032, %v1067
    %v1097 = vadd.f32 %v1033, %v1069
    %v1098 = vadd.f32 %v1034, %v1071
    %v1099 = vadd.f32 %v1035, %v1073
    %v1100 = vadd.f32 %v1036, %v1075
    %v1101 = vadd.f32 %v1037, %v1077
    %v1102 = vadd.f32 %v1038, %v1079
    %v1103 = vadd.f32 %v1039, %v1081
    %v1104 = vadd.f32 %v1040, %v1083
    %v1105 = vadd.f32 %v1041, %v1085
    %v1106 = vadd.f32 %v1042, %v1087
    %v1107 = vadd.f32 %v1043, %v1089
    %v1108 = vadd.f32 %v1044, %v1091
    %v1109 = vadd.f32 %v1045, %v1093
    %v1110 = vld [vmem:[#allocation4] sm:$0xff]
    %v1111 = vld [vmem:[#allocation4 + $0x8] sm:$0xff]
    %v1112 = vld [vmem:[#allocation4 + $0x10] sm:$0xff]
    %v1113 = vld [vmem:[#allocation4 + $0x18] sm:$0xff]
    %v1114 = vld [vmem:[#allocation4 + $0x20] sm:$0xff]
    %v1115 = vld [vmem:[#allocation4 + $0x28] sm:$0xff]
    %v1116 = vld [vmem:[#allocation4 + $0x30] sm:$0xff]
    %v1117 = vld [vmem:[#allocation4 + $0x38] sm:$0xff]
    %v1118 = vld [vmem:[#allocation4 + $0x40] sm:$0xff]
    %v1119 = vld [vmem:[#allocation4 + $0x48] sm:$0xff]
    %v1120 = vld [vmem:[#allocation4 + $0x50] sm:$0xff]
    %v1121 = vld [vmem:[#allocation4 + $0x58] sm:$0xff]
    %v1122 = vld [vmem:[#allocation4 + $0x60] sm:$0xff]
    %v1123 = vld [vmem:[#allocation4 + $0x68] sm:$0xff]
    %v1124 = vld [vmem:[#allocation4 + $0x70] sm:$0xff]
    %v1125 = vld [vmem:[#allocation4 + $0x78] sm:$0xff]
    %v1126 = vld [vmem:[#allocation5] sm:$0xff]
    %v1127 = vld [vmem:[#allocation5 + $0x8] sm:$0xff]
    %v1128 = vld [vmem:[#allocation5 + $0x10] sm:$0xff]
    %v1129 = vld [vmem:[#allocation5 + $0x18] sm:$0xff]
    %v1130 = vld [vmem:[#allocation5 + $0x20] sm:$0xff]
    %v1131 = vld [vmem:[#allocation5 + $0x28] sm:$0xff]
    %v1132 = vld [vmem:[#allocation5 + $0x30] sm:$0xff]
    %v1133 = vld [vmem:[#allocation5 + $0x38] sm:$0xff]
    %v1134 = vld [vmem:[#allocation5 + $0x40] sm:$0xff]
    %v1135 = vld [vmem:[#allocation5 + $0x48] sm:$0xff]
    %v1136 = vld [vmem:[#allocation5 + $0x50] sm:$0xff]
    %v1137 = vld [vmem:[#allocation5 + $0x58] sm:$0xff]
    %v1138 = vld [vmem:[#allocation5 + $0x60] sm:$0xff]
    %v1139 = vld [vmem:[#allocation5 + $0x68] sm:$0xff]
    %v1140 = vld [vmem:[#allocation5 + $0x70] sm:$0xff]
    %v1141 = vld [vmem:[#allocation5 + $0x78] sm:$0xff]
    %v1142 = vrcp.pop %v1126
    %v1143 = vmul.f32 %v1126, %v1142
    %v1144 = vsub.f32 1.0, %v1143
    %v1145 = vmul.f32 %v1142, %v1144
    %v1146 = vadd.f32 %v1142, %v1145
    %vm1147 = vweird.f32 %v1126
    %vm1148 = vweird.f32 %v1142
    %vm1149 = vmor %vm1147, %vm1148
    %v1150 = vsel %vm1149, %v1142, %v1146
    %v1151 = vand.u32 2147483647, %v1126
    %vm1152 = vcmp.eq.f32.partialorder %v1151, 8.507059e+37
    %v1153 = vand.u32 %v1126, 2147483648
    %v1154 = vor.u32 1.1754944e-38, %v1153
    %v1155 = vsel %vm1152, %v1154, %v1150
    %v1156 = vmul.f32 %v1110, %v1155
    %v1157 = vrcp.pop %v1127
    %v1158 = vmul.f32 %v1127, %v1157
    %v1159 = vsub.f32 1.0, %v1158
    %v1160 = vmul.f32 %v1157, %v1159
    %v1161 = vadd.f32 %v1157, %v1160
    %vm1162 = vweird.f32 %v1127
    %vm1163 = vweird.f32 %v1157
    %vm1164 = vmor %vm1162, %vm1163
    %v1165 = vsel %vm1164, %v1157, %v1161
    %v1166 = vand.u32 2147483647, %v1127
    %vm1167 = vcmp.eq.f32.partialorder %v1166, 8.507059e+37
    %v1168 = vand.u32 %v1127, 2147483648
    %v1169 = vor.u32 1.1754944e-38, %v1168
    %v1170 = vsel %vm1167, %v1169, %v1165
    %v1171 = vmul.f32 %v1111, %v1170
    %v1172 = vrcp.pop %v1128
    %v1173 = vmul.f32 %v1128, %v1172
    %v1174 = vsub.f32 1.0, %v1173
    %v1175 = vmul.f32 %v1172, %v1174
    %v1176 = vadd.f32 %v1172, %v1175
    %vm1177 = vweird.f32 %v1128
    %vm1178 = vweird.f32 %v1172
    %vm1179 = vmor %vm1177, %vm1178
    %v1180 = vsel %vm1179, %v1172, %v1176
    %v1181 = vand.u32 2147483647, %v1128
    %vm1182 = vcmp.eq.f32.partialorder %v1181, 8.507059e+37
    %v1183 = vand.u32 %v1128, 2147483648
    %v1184 = vor.u32 1.1754944e-38, %v1183
    %v1185 = vsel %vm1182, %v1184, %v1180
    %v1186 = vmul.f32 %v1112, %v1185
    %v1187 = vrcp.pop %v1129
    %v1188 = vmul.f32 %v1129, %v1187
    %v1189 = vsub.f32 1.0, %v1188
    %v1190 = vmul.f32 %v1187, %v1189
    %v1191 = vadd.f32 %v1187, %v1190
    %vm1192 = vweird.f32 %v1129
    %vm1193 = vweird.f32 %v1187
    %vm1194 = vmor %vm1192, %vm1193
    %v1195 = vsel %vm1194, %v1187, %v1191
    %v1196 = vand.u32 2147483647, %v1129
    %vm1197 = vcmp.eq.f32.partialorder %v1196, 8.507059e+37
    %v1198 = vand.u32 %v1129, 2147483648
    %v1199 = vor.u32 1.1754944e-38, %v1198
    %v1200 = vsel %vm1197, %v1199, %v1195
    %v1201 = vmul.f32 %v1113, %v1200
    %v1202 = vrcp.pop %v1130
    %v1203 = vmul.f32 %v1130, %v1202
    %v1204 = vsub.f32 1.0, %v1203
    %v1205 = vmul.f32 %v1202, %v1204
    %v1206 = vadd.f32 %v1202, %v1205
    %vm1207 = vweird.f32 %v1130
    %vm1208 = vweird.f32 %v1202
    %vm1209 = vmor %vm1207, %vm1208
    %v1210 = vsel %vm1209, %v1202, %v1206
    %v1211 = vand.u32 2147483647, %v1130
    %vm1212 = vcmp.eq.f32.partialorder %v1211, 8.507059e+37
    %v1213 = vand.u32 %v1130, 2147483648
    %v1214 = vor.u32 1.1754944e-38, %v1213
    %v1215 = vsel %vm1212, %v1214, %v1210
    %v1216 = vmul.f32 %v1114, %v1215
    %v1217 = vrcp.pop %v1131
    %v1218 = vmul.f32 %v1131, %v1217
    %v1219 = vsub.f32 1.0, %v1218
    %v1220 = vmul.f32 %v1217, %v1219
    %v1221 = vadd.f32 %v1217, %v1220
    %vm1222 = vweird.f32 %v1131
    %vm1223 = vweird.f32 %v1217
    %vm1224 = vmor %vm1222, %vm1223
    %v1225 = vsel %vm1224, %v1217, %v1221
    %v1226 = vand.u32 2147483647, %v1131
    %vm1227 = vcmp.eq.f32.partialorder %v1226, 8.507059e+37
    %v1228 = vand.u32 %v1131, 2147483648
    %v1229 = vor.u32 1.1754944e-38, %v1228
    %v1230 = vsel %vm1227, %v1229, %v1225
    %v1231 = vmul.f32 %v1115, %v1230
    %v1232 = vrcp.pop %v1132
    %v1233 = vmul.f32 %v1132, %v1232
    %v1234 = vsub.f32 1.0, %v1233
    %v1235 = vmul.f32 %v1232, %v1234
    %v1236 = vadd.f32 %v1232, %v1235
    %vm1237 = vweird.f32 %v1132
    %vm1238 = vweird.f32 %v1232
    %vm1239 = vmor %vm1237, %vm1238
    %v1240 = vsel %vm1239, %v1232, %v1236
    %v1241 = vand.u32 2147483647, %v1132
    %vm1242 = vcmp.eq.f32.partialorder %v1241, 8.507059e+37
    %v1243 = vand.u32 %v1132, 2147483648
    %v1244 = vor.u32 1.1754944e-38, %v1243
    %v1245 = vsel %vm1242, %v1244, %v1240
    %v1246 = vmul.f32 %v1116, %v1245
    %v1247 = vrcp.pop %v1133
    %v1248 = vmul.f32 %v1133, %v1247
    %v1249 = vsub.f32 1.0, %v1248
    %v1250 = vmul.f32 %v1247, %v1249
    %v1251 = vadd.f32 %v1247, %v1250
    %vm1252 = vweird.f32 %v1133
    %vm1253 = vweird.f32 %v1247
    %vm1254 = vmor %vm1252, %vm1253
    %v1255 = vsel %vm1254, %v1247, %v1251
    %v1256 = vand.u32 2147483647, %v1133
    %vm1257 = vcmp.eq.f32.partialorder %v1256, 8.507059e+37
    %v1258 = vand.u32 %v1133, 2147483648
    %v1259 = vor.u32 1.1754944e-38, %v1258
    %v1260 = vsel %vm1257, %v1259, %v1255
    %v1261 = vmul.f32 %v1117, %v1260
    %v1262 = vrcp.pop %v1134
    %v1263 = vmul.f32 %v1134, %v1262
    %v1264 = vsub.f32 1.0, %v1263
    %v1265 = vmul.f32 %v1262, %v1264
    %v1266 = vadd.f32 %v1262, %v1265
    %vm1267 = vweird.f32 %v1134
    %vm1268 = vweird.f32 %v1262
    %vm1269 = vmor %vm1267, %vm1268
    %v1270 = vsel %vm1269, %v1262, %v1266
    %v1271 = vand.u32 2147483647, %v1134
    %vm1272 = vcmp.eq.f32.partialorder %v1271, 8.507059e+37
    %v1273 = vand.u32 %v1134, 2147483648
    %v1274 = vor.u32 1.1754944e-38, %v1273
    %v1275 = vsel %vm1272, %v1274, %v1270
    %v1276 = vmul.f32 %v1118, %v1275
    %v1277 = vrcp.pop %v1135
    %v1278 = vmul.f32 %v1135, %v1277
    %v1279 = vsub.f32 1.0, %v1278
    %v1280 = vmul.f32 %v1277, %v1279
    %v1281 = vadd.f32 %v1277, %v1280
    %vm1282 = vweird.f32 %v1135
    %vm1283 = vweird.f32 %v1277
    %vm1284 = vmor %vm1282, %vm1283
    %v1285 = vsel %vm1284, %v1277, %v1281
    %v1286 = vand.u32 2147483647, %v1135
    %vm1287 = vcmp.eq.f32.partialorder %v1286, 8.507059e+37
    %v1288 = vand.u32 %v1135, 2147483648
    %v1289 = vor.u32 1.1754944e-38, %v1288
    %v1290 = vsel %vm1287, %v1289, %v1285
    %v1291 = vmul.f32 %v1119, %v1290
    %v1292 = vrcp.pop %v1136
    %v1293 = vmul.f32 %v1136, %v1292
    %v1294 = vsub.f32 1.0, %v1293
    %v1295 = vmul.f32 %v1292, %v1294
    %v1296 = vadd.f32 %v1292, %v1295
    %vm1297 = vweird.f32 %v1136
    %vm1298 = vweird.f32 %v1292
    %vm1299 = vmor %vm1297, %vm1298
    %v1300 = vsel %vm1299, %v1292, %v1296
    %v1301 = vand.u32 2147483647, %v1136
    %vm1302 = vcmp.eq.f32.partialorder %v1301, 8.507059e+37
    %v1303 = vand.u32 %v1136, 2147483648
    %v1304 = vor.u32 1.1754944e-38, %v1303
    %v1305 = vsel %vm1302, %v1304, %v1300
    %v1306 = vmul.f32 %v1120, %v1305
    %v1307 = vrcp.pop %v1137
    %v1308 = vmul.f32 %v1137, %v1307
    %v1309 = vsub.f32 1.0, %v1308
    %v1310 = vmul.f32 %v1307, %v1309
    %v1311 = vadd.f32 %v1307, %v1310
    %vm1312 = vweird.f32 %v1137
    %vm1313 = vweird.f32 %v1307
    %vm1314 = vmor %vm1312, %vm1313
    %v1315 = vsel %vm1314, %v1307, %v1311
    %v1316 = vand.u32 2147483647, %v1137
    %vm1317 = vcmp.eq.f32.partialorder %v1316, 8.507059e+37
    %v1318 = vand.u32 %v1137, 2147483648
    %v1319 = vor.u32 1.1754944e-38, %v1318
    %v1320 = vsel %vm1317, %v1319, %v1315
    %v1321 = vmul.f32 %v1121, %v1320
    %v1322 = vrcp.pop %v1138
    %v1323 = vmul.f32 %v1138, %v1322
    %v1324 = vsub.f32 1.0, %v1323
    %v1325 = vmul.f32 %v1322, %v1324
    %v1326 = vadd.f32 %v1322, %v1325
    %vm1327 = vweird.f32 %v1138
    %vm1328 = vweird.f32 %v1322
    %vm1329 = vmor %vm1327, %vm1328
    %v1330 = vsel %vm1329, %v1322, %v1326
    %v1331 = vand.u32 2147483647, %v1138
    %vm1332 = vcmp.eq.f32.partialorder %v1331, 8.507059e+37
    %v1333 = vand.u32 %v1138, 2147483648
    %v1334 = vor.u32 1.1754944e-38, %v1333
    %v1335 = vsel %vm1332, %v1334, %v1330
    %v1336 = vmul.f32 %v1122, %v1335
    %v1337 = vrcp.pop %v1139
    %v1338 = vmul.f32 %v1139, %v1337
    %v1339 = vsub.f32 1.0, %v1338
    %v1340 = vmul.f32 %v1337, %v1339
    %v1341 = vadd.f32 %v1337, %v1340
    %vm1342 = vweird.f32 %v1139
    %vm1343 = vweird.f32 %v1337
    %vm1344 = vmor %vm1342, %vm1343
    %v1345 = vsel %vm1344, %v1337, %v1341
    %v1346 = vand.u32 2147483647, %v1139
    %vm1347 = vcmp.eq.f32.partialorder %v1346, 8.507059e+37
    %v1348 = vand.u32 %v1139, 2147483648
    %v1349 = vor.u32 1.1754944e-38, %v1348
    %v1350 = vsel %vm1347, %v1349, %v1345
    %v1351 = vmul.f32 %v1123, %v1350
    %v1352 = vrcp.pop %v1140
    %v1353 = vmul.f32 %v1140, %v1352
    %v1354 = vsub.f32 1.0, %v1353
    %v1355 = vmul.f32 %v1352, %v1354
    %v1356 = vadd.f32 %v1352, %v1355
    %vm1357 = vweird.f32 %v1140
    %vm1358 = vweird.f32 %v1352
    %vm1359 = vmor %vm1357, %vm1358
    %v1360 = vsel %vm1359, %v1352, %v1356
    %v1361 = vand.u32 2147483647, %v1140
    %vm1362 = vcmp.eq.f32.partialorder %v1361, 8.507059e+37
    %v1363 = vand.u32 %v1140, 2147483648
    %v1364 = vor.u32 1.1754944e-38, %v1363
    %v1365 = vsel %vm1362, %v1364, %v1360
    %v1366 = vmul.f32 %v1124, %v1365
    %v1367 = vrcp.pop %v1141
    %v1368 = vmul.f32 %v1141, %v1367
    %v1369 = vsub.f32 1.0, %v1368
    %v1370 = vmul.f32 %v1367, %v1369
    %v1371 = vadd.f32 %v1367, %v1370
    %vm1372 = vweird.f32 %v1141
    %vm1373 = vweird.f32 %v1367
    %vm1374 = vmor %vm1372, %vm1373
    %v1375 = vsel %vm1374, %v1367, %v1371
    %v1376 = vand.u32 2147483647, %v1141
    %vm1377 = vcmp.eq.f32.partialorder %v1376, 8.507059e+37
    %v1378 = vand.u32 %v1141, 2147483648
    %v1379 = vor.u32 1.1754944e-38, %v1378
    %v1380 = vsel %vm1377, %v1379, %v1375
    %v1381 = vmul.f32 %v1125, %v1380
    %v1382 = vsub.f32 %v1156, %v1094
    %v1383 = vsub.f32 %v1171, %v1095
    %v1384 = vsub.f32 %v1186, %v1096
    %v1385 = vsub.f32 %v1201, %v1097
    %v1386 = vsub.f32 %v1216, %v1098
    %v1387 = vsub.f32 %v1231, %v1099
    %v1388 = vsub.f32 %v1246, %v1100
    %v1389 = vsub.f32 %v1261, %v1101
    %v1390 = vsub.f32 %v1276, %v1102
    %v1391 = vsub.f32 %v1291, %v1103
    %v1392 = vsub.f32 %v1306, %v1104
    %v1393 = vsub.f32 %v1321, %v1105
    %v1394 = vsub.f32 %v1336, %v1106
    %v1395 = vsub.f32 %v1351, %v1107
    %v1396 = vsub.f32 %v1366, %v1108
    %v1397 = vsub.f32 %v1381, %v1109
    %v1398 = vmul.f32 %v1382, -1.0
    %v1399 = vmul.f32 %v1383, -1.0
    %v1400 = vmul.f32 %v1384, -1.0
    %v1401 = vmul.f32 %v1385, -1.0
    %v1402 = vmul.f32 %v1386, -1.0
    %v1403 = vmul.f32 %v1387, -1.0
    %v1404 = vmul.f32 %v1388, -1.0
    %v1405 = vmul.f32 %v1389, -1.0
    %v1406 = vmul.f32 %v1390, -1.0
    %v1407 = vmul.f32 %v1391, -1.0
    %v1408 = vmul.f32 %v1392, -1.0
    %v1409 = vmul.f32 %v1393, -1.0
    %v1410 = vmul.f32 %v1394, -1.0
    %v1411 = vmul.f32 %v1395, -1.0
    %v1412 = vmul.f32 %v1396, -1.0
    %v1413 = vmul.f32 %v1397, -1.0
    %1414 = vst.msk [vmem:[%s4] sm:$0xff] %vm786, %v1398
    %1415 = vst.msk [vmem:[%s4 + $0x8] sm:$0xff] %vm786, %v1399
    %1416 = vst.msk [vmem:[%s4 + $0x10] sm:$0xff] %vm786, %v1400
    %1417 = vst.msk [vmem:[%s4 + $0x18] sm:$0xff] %vm786, %v1401
    %1418 = vst.msk [vmem:[%s4 + $0x20] sm:$0xff] %vm786, %v1402
    %1419 = vst.msk [vmem:[%s4 + $0x28] sm:$0xff] %vm786, %v1403
    %1420 = vst.msk [vmem:[%s4 + $0x30] sm:$0xff] %vm786, %v1404
    %1421 = vst.msk [vmem:[%s4 + $0x38] sm:$0xff] %vm786, %v1405
    %1422 = vst.msk [vmem:[%s4 + $0x40] sm:$0xff] %vm786, %v1406
    %1423 = vst.msk [vmem:[%s4 + $0x48] sm:$0xff] %vm786, %v1407
    %1424 = vst.msk [vmem:[%s4 + $0x50] sm:$0xff] %vm786, %v1408
    %1425 = vst.msk [vmem:[%s4 + $0x58] sm:$0xff] %vm786, %v1409
    %1426 = vst.msk [vmem:[%s4 + $0x60] sm:$0xff] %vm786, %v1410
    %1427 = vst.msk [vmem:[%s4 + $0x68] sm:$0xff] %vm786, %v1411
    %1428 = vst.msk [vmem:[%s4 + $0x70] sm:$0xff] %vm786, %v1412
    %1429 = vst.msk [vmem:[%s4 + $0x78] sm:$0xff] %vm786, %v1413
  $region25: #{tpu_custom_call.1} parent=0 // pred_fallthru
    _
  // Predicated region
  $region26: #{tpu_custom_call.1} parent=0 // pred_check
    _
  $region27: #{tpu_custom_call.1} parent=0 // pred_check_branch
    %1431 = sbr.rel (0) target = $region29
  $region28: #{tpu_custom_call.1} parent=0 // pred_region
    _
  $region29: #{tpu_custom_call.1} parent=0 // pred_fallthru
    _
  // Predicated region
  $region30: #{tpu_custom_call.1} parent=0 // pred_check
    _
  $region31: #{tpu_custom_call.1} parent=0 // pred_check_branch
    %1433 = sbr.rel (0) target = $region33
  $region32: #{tpu_custom_call.1} parent=0 // pred_region
    _
  $region33: #{tpu_custom_call.1} parent=0 // pred_fallthru
    _

</llo_original>
